<compile_context>
chip_gen: v6e
topology: v6e:2x2x1
jax: 0.10.0
libtpu: 0.0.40
codegen_flags: <defaults>
</compile_context>

<pallas_src>
import functools

import jax
import jax.numpy as jnp
from jax.experimental import pallas as pl
from jax.experimental.pallas import tpu as pltpu


def _zinb_kernel(eps,
                 x_ref,
                 wm_ref, wt_ref, ws_ref, wg_ref,
                 bm_ref, bt_ref, bs_ref, bg_ref,
                 mu_ref, th_ref, sc_ref, gate_ref):
    x = x_ref[...]
    w_refs = (wm_ref, wt_ref, ws_ref, wg_ref)
    b_refs = (bm_ref, bt_ref, bs_ref, bg_ref)
    o_refs = (mu_ref, th_ref, sc_ref, gate_ref)
    # Static 4-way unrolled loop: each head's (tm, tn) result is produced,
    # post-processed and stored before the next head's matmul result is
    # popped — live vregs stay at one (tm, tn) tile, no VMEM spills, and the
    # EUP/VALU epilogue overlaps the next head's MXU push.
    for k in range(4):
        y = jnp.dot(x, w_refs[k][...], preferred_element_type=jnp.float32)
        y = y + b_refs[k][...]
        if k < 3:  # mu / theta / scale get exp(.) + eps; gate stays a logit.
            y = jnp.exp(y) + eps
        o_refs[k][...] = y.astype(o_refs[k].dtype)


def _round_up(x, m):
    return ((x + m - 1) // m) * m


def zinb_proj(x, params, eps, *, tm=None, tn=None, out_dtype=jnp.float32):
    """x: [n_cells, embed_dim] f32.  params: dict name -> (w [E, G], b [1, G]).

    out_dtype=jnp.bfloat16 halves HBM write traffic (deliberate numerics
    deviation from the f32 PyTorch reference); default f32 matches exactly.
    """
    n_cells, embed_dim = x.shape
    names = ("mu", "theta", "scale", "gate_logit")
    n_genes = params["mu"][0].shape[1]

    # ---- VMEM budget: hardware-derived, with headroom for Mosaic scratch ----
    try:
        vmem_cap = int(pltpu.get_tpu_info().vmem_capacity_bytes)
    except Exception:  # conservative fallback = v7x per-TensorCore VMEM
        vmem_cap = 64 << 20
    vmem_budget = max(vmem_cap - (16 << 20), 32 << 20)

    # ---- Tile selection (output-bandwidth bound: as big as VMEM allows) ----
    if tm is None:
        tm = min(256, _round_up(n_cells, 8))
    if tn is None:
        tn = 1024 if vmem_cap <= (64 << 20) else 2048   # v7x vs v5e/v6e
        tn = min(tn, _round_up(n_genes, 128))

    def footprint(tm_, tn_):
        # Double-buffered f32 bytes: x block, 4 weight blocks, 4 bias blocks,
        # 4 output blocks.
        per_step = (tm_ * embed_dim + 4 * embed_dim * tn_ + 4 * tn_
                    + 4 * tm_ * tn_)
        return 2 * 4 * per_step

    while footprint(tm, tn) > vmem_budget and tn > 512:
        tn = max(512, (tn // 2 // 128) * 128)
    while footprint(tm, tn) > vmem_budget and tm > 64:
        tm = max(64, (tm // 2 // 8) * 8)

    # ---- Pad to tile multiples; outputs sliced back afterwards ----
    mp = _round_up(n_cells, tm)
    gp = _round_up(n_genes, tn)
    xp = jnp.pad(x, ((0, mp - n_cells), (0, 0))) if mp != n_cells else x
    ws, bs = [], []
    for name in names:
        w, b = params[name]
        if gp != n_genes:
            # TODO(synk): for repeated inference, pad weights once at
            # parameter-load time instead of per call.
            w = jnp.pad(w, ((0, 0), (0, gp - n_genes)))
            b = jnp.pad(b, ((0, 0), (0, gp - n_genes)))
        ws.append(w)
        bs.append(b)

    n_cell_tiles = mp // tm
    n_gene_tiles = gp // tn

    # Genes outermost keeps the (large) weight blocks resident across the
    # inner cell loop.  If there are too few gene tiles to shard across both
    # TensorCores (v7x megacore), put cells outermost instead — the weight
    # index is constant in that case, so residency is unaffected.
    genes_outer = (n_gene_tiles >= 2) or (n_cell_tiles < 2)
    if genes_outer:
        grid = (n_gene_tiles, n_cell_tiles)
        cell_ix = lambda a, b: b
        gene_ix = lambda a, b: a
    else:
        grid = (n_cell_tiles, n_gene_tiles)
        cell_ix = lambda a, b: a
        gene_ix = lambda a, b: b

    x_spec = pl.BlockSpec((tm, embed_dim), lambda a, b: (cell_ix(a, b), 0))
    w_spec = pl.BlockSpec((embed_dim, tn), lambda a, b: (0, gene_ix(a, b)))
    b_spec = pl.BlockSpec((1, tn), lambda a, b: (0, gene_ix(a, b)))
    o_spec = pl.BlockSpec((tm, tn), lambda a, b: (cell_ix(a, b), gene_ix(a, b)))

    out_shape = jax.ShapeDtypeStruct((mp, gp), out_dtype)
    vmem_limit = int(min(max(2 * footprint(tm, tn), 32 << 20), vmem_budget))

    kernel = functools.partial(_zinb_kernel, float(eps))

    mu, theta, scale, gate = pl.pallas_call(
        kernel,
        out_shape=(out_shape, out_shape, out_shape, out_shape),
        grid_spec=pltpu.PrefetchScalarGridSpec(
            num_scalar_prefetch=0,
            grid=grid,
            in_specs=[x_spec] + [w_spec] * 4 + [b_spec] * 4,
            out_specs=[o_spec, o_spec, o_spec, o_spec],
        ),
        compiler_params=pltpu.CompilerParams(
            dimension_semantics=("parallel", "parallel"),
            vmem_limit_bytes=vmem_limit),
    )(xp, *ws, *bs)

    def crop(a):
        return a[:n_cells, :n_genes] if (mp != n_cells or gp != n_genes) else a

    return dict(mu=crop(mu), theta=crop(theta),
                zi_logits=crop(gate), scale=crop(scale))


def init_params(key, embed_dim, n_genes):
    """Deterministic PyTorch-nn.Linear-style init (uniform(-1/sqrt(E), 1/sqrt(E)))."""
    bound = 1.0 / (embed_dim ** 0.5)
    params = {}
    for name in ("mu", "theta", "scale", "gate_logit"):
        key, kw, kb = jax.random.split(key, 3)
        w = jax.random.uniform(kw, (embed_dim, n_genes), jnp.float32, -bound, bound)
        b = jax.random.uniform(kb, (1, n_genes), jnp.float32, -bound, bound)
        params[name] = (w, b)
    return params


def zinb_proj_ref(x, params, eps):
    """Pure-JAX reference matching the PyTorch forward."""
    def lin(name):
        w, b = params[name]
        return jnp.dot(x, w, precision=jax.lax.Precision.HIGHEST) + b
    return dict(
        mu=jnp.exp(lin("mu")) + eps,
        theta=jnp.exp(lin("theta")) + eps,
        zi_logits=lin("gate_logit"),
        scale=jnp.exp(lin("scale")) + eps,
    )


if __name__ == "__main__":
    # Small, deliberately non-tile-aligned shapes to exercise the padding path.
    n_cells, embed_dim, n_genes = 96, 32, 300
    eps = 1e-6

    key = jax.random.PRNGKey(0)
    key, kx = jax.random.split(key)
    x = jax.random.normal(kx, (n_cells, embed_dim), jnp.float32)
    params = init_params(key, embed_dim, n_genes)

    out = zinb_proj(x, params, eps)
    out = jax.tree_util.tree_map(jax.block_until_ready, out)

    ref = zinb_proj_ref(x, params, eps)
    for k in ("mu", "theta", "zi_logits", "scale"):
        assert out[k].shape == (n_cells, n_genes), (k, out[k].shape)
        assert jnp.allclose(out[k], ref[k], rtol=5e-5, atol=1e-5), k

    print("KERNEL_OK")
</pallas_src>

<mosaic_0001>
module attributes {stable_mosaic.version = 11 : i64} {
  func.func @_zinb_kernel(%arg0: i32, %arg1: i32, %arg2: memref<96x32xf32, #tpu.memory_space<vmem>>, %arg3: memref<32x384xf32, #tpu.memory_space<vmem>>, %arg4: memref<32x384xf32, #tpu.memory_space<vmem>>, %arg5: memref<32x384xf32, #tpu.memory_space<vmem>>, %arg6: memref<32x384xf32, #tpu.memory_space<vmem>>, %arg7: memref<1x384xf32, #tpu.memory_space<vmem>>, %arg8: memref<1x384xf32, #tpu.memory_space<vmem>>, %arg9: memref<1x384xf32, #tpu.memory_space<vmem>>, %arg10: memref<1x384xf32, #tpu.memory_space<vmem>>, %arg11: memref<96x384xf32, #tpu.memory_space<vmem>>, %arg12: memref<96x384xf32, #tpu.memory_space<vmem>>, %arg13: memref<96x384xf32, #tpu.memory_space<vmem>>, %arg14: memref<96x384xf32, #tpu.memory_space<vmem>>) attributes {dimension_semantics = [#tpu.dimension_semantics<parallel>, #tpu.dimension_semantics<parallel>], iteration_bounds = array<i64: 1, 1>, scalar_prefetch = 0 : i64, scratch_operands = 0 : i64, tpu.core_type = #tpu.core_type<tc>, window_params = [{transform_indices = @transform_0, window_bounds = array<i64: 96, 32>}, {transform_indices = @transform_1, window_bounds = array<i64: 32, 384>}, {transform_indices = @transform_2, window_bounds = array<i64: 32, 384>}, {transform_indices = @transform_3, window_bounds = array<i64: 32, 384>}, {transform_indices = @transform_4, window_bounds = array<i64: 32, 384>}, {transform_indices = @transform_5, window_bounds = array<i64: 1, 384>}, {transform_indices = @transform_6, window_bounds = array<i64: 1, 384>}, {transform_indices = @transform_7, window_bounds = array<i64: 1, 384>}, {transform_indices = @transform_8, window_bounds = array<i64: 1, 384>}, {transform_indices = @transform_9, window_bounds = array<i64: 96, 384>}, {transform_indices = @transform_10, window_bounds = array<i64: 96, 384>}, {transform_indices = @transform_11, window_bounds = array<i64: 96, 384>}, {transform_indices = @transform_12, window_bounds = array<i64: 96, 384>}]} {
    %c0 = arith.constant 0 : index
    %c0_0 = arith.constant 0 : index
    %0 = vector.load %arg2[%c0, %c0_0] : memref<96x32xf32, #tpu.memory_space<vmem>>, vector<96x32xf32>
    %c0_1 = arith.constant 0 : index
    %c0_2 = arith.constant 0 : index
    %1 = vector.load %arg3[%c0_1, %c0_2] : memref<32x384xf32, #tpu.memory_space<vmem>>, vector<32x384xf32>
    %cst = arith.constant dense<0.000000e+00> : vector<96x384xf32>
    %2 = tpu.matmul %0, %1, %cst {dimension_numbers = #tpu.dot_dimension_numbers<[1], [0], [0], [1], [0, 0, 1, 1], [], []>} : vector<96x32xf32>, vector<32x384xf32>, vector<96x384xf32> -> vector<96x384xf32>
    %c0_3 = arith.constant 0 : index
    %c0_4 = arith.constant 0 : index
    %3 = vector.load %arg7[%c0_3, %c0_4] : memref<1x384xf32, #tpu.memory_space<vmem>>, vector<1x384xf32>
    %4 = vector.broadcast %3 : vector<1x384xf32> to vector<96x384xf32>
    %5 = arith.addf %2, %4 : vector<96x384xf32>
    %6 = math.exp %5 : vector<96x384xf32>
    %cst_5 = arith.constant 9.99999997E-7 : f32
    %7 = vector.broadcast %cst_5 : f32 to vector<96x384xf32>
    %8 = arith.addf %6, %7 : vector<96x384xf32>
    %c0_6 = arith.constant 0 : index
    %c0_7 = arith.constant 0 : index
    %9 = vector.load %arg11[%c0_6, %c0_7] : memref<96x384xf32, #tpu.memory_space<vmem>>, vector<96x384xf32>
    tpu.vector_store %arg11[%c0_6, %c0_7], %8 {strides = array<i32>} : memref<96x384xf32, #tpu.memory_space<vmem>>, vector<96x384xf32>,
    %c0_8 = arith.constant 0 : index
    %c0_9 = arith.constant 0 : index
    %10 = vector.load %arg4[%c0_8, %c0_9] : memref<32x384xf32, #tpu.memory_space<vmem>>, vector<32x384xf32>
    %cst_10 = arith.constant dense<0.000000e+00> : vector<96x384xf32>
    %11 = tpu.matmul %0, %10, %cst_10 {dimension_numbers = #tpu.dot_dimension_numbers<[1], [0], [0], [1], [0, 0, 1, 1], [], []>} : vector<96x32xf32>, vector<32x384xf32>, vector<96x384xf32> -> vector<96x384xf32>
    %c0_11 = arith.constant 0 : index
    %c0_12 = arith.constant 0 : index
    %12 = vector.load %arg8[%c0_11, %c0_12] : memref<1x384xf32, #tpu.memory_space<vmem>>, vector<1x384xf32>
    %13 = vector.broadcast %12 : vector<1x384xf32> to vector<96x384xf32>
    %14 = arith.addf %11, %13 : vector<96x384xf32>
    %15 = math.exp %14 : vector<96x384xf32>
    %cst_13 = arith.constant 9.99999997E-7 : f32
    %16 = vector.broadcast %cst_13 : f32 to vector<96x384xf32>
    %17 = arith.addf %15, %16 : vector<96x384xf32>
    %c0_14 = arith.constant 0 : index
    %c0_15 = arith.constant 0 : index
    %18 = vector.load %arg12[%c0_14, %c0_15] : memref<96x384xf32, #tpu.memory_space<vmem>>, vector<96x384xf32>
    tpu.vector_store %arg12[%c0_14, %c0_15], %17 {strides = array<i32>} : memref<96x384xf32, #tpu.memory_space<vmem>>, vector<96x384xf32>,
    %c0_16 = arith.constant 0 : index
    %c0_17 = arith.constant 0 : index
    %19 = vector.load %arg5[%c0_16, %c0_17] : memref<32x384xf32, #tpu.memory_space<vmem>>, vector<32x384xf32>
    %cst_18 = arith.constant dense<0.000000e+00> : vector<96x384xf32>
    %20 = tpu.matmul %0, %19, %cst_18 {dimension_numbers = #tpu.dot_dimension_numbers<[1], [0], [0], [1], [0, 0, 1, 1], [], []>} : vector<96x32xf32>, vector<32x384xf32>, vector<96x384xf32> -> vector<96x384xf32>
    %c0_19 = arith.constant 0 : index
    %c0_20 = arith.constant 0 : index
    %21 = vector.load %arg9[%c0_19, %c0_20] : memref<1x384xf32, #tpu.memory_space<vmem>>, vector<1x384xf32>
    %22 = vector.broadcast %21 : vector<1x384xf32> to vector<96x384xf32>
    %23 = arith.addf %20, %22 : vector<96x384xf32>
    %24 = math.exp %23 : vector<96x384xf32>
    %cst_21 = arith.constant 9.99999997E-7 : f32
    %25 = vector.broadcast %cst_21 : f32 to vector<96x384xf32>
    %26 = arith.addf %24, %25 : vector<96x384xf32>
    %c0_22 = arith.constant 0 : index
    %c0_23 = arith.constant 0 : index
    %27 = vector.load %arg13[%c0_22, %c0_23] : memref<96x384xf32, #tpu.memory_space<vmem>>, vector<96x384xf32>
    tpu.vector_store %arg13[%c0_22, %c0_23], %26 {strides = array<i32>} : memref<96x384xf32, #tpu.memory_space<vmem>>, vector<96x384xf32>,
    %c0_24 = arith.constant 0 : index
    %c0_25 = arith.constant 0 : index
    %28 = vector.load %arg6[%c0_24, %c0_25] : memref<32x384xf32, #tpu.memory_space<vmem>>, vector<32x384xf32>
    %cst_26 = arith.constant dense<0.000000e+00> : vector<96x384xf32>
    %29 = tpu.matmul %0, %28, %cst_26 {dimension_numbers = #tpu.dot_dimension_numbers<[1], [0], [0], [1], [0, 0, 1, 1], [], []>} : vector<96x32xf32>, vector<32x384xf32>, vector<96x384xf32> -> vector<96x384xf32>
    %c0_27 = arith.constant 0 : index
    %c0_28 = arith.constant 0 : index
    %30 = vector.load %arg10[%c0_27, %c0_28] : memref<1x384xf32, #tpu.memory_space<vmem>>, vector<1x384xf32>
    %31 = vector.broadcast %30 : vector<1x384xf32> to vector<96x384xf32>
    %32 = arith.addf %29, %31 : vector<96x384xf32>
    %c0_29 = arith.constant 0 : index
    %c0_30 = arith.constant 0 : index
    %33 = vector.load %arg14[%c0_29, %c0_30] : memref<96x384xf32, #tpu.memory_space<vmem>>, vector<96x384xf32>
    tpu.vector_store %arg14[%c0_29, %c0_30], %32 {strides = array<i32>} : memref<96x384xf32, #tpu.memory_space<vmem>>, vector<96x384xf32>,
    return
  }
  func.func @transform_0(%arg0: i32, %arg1: i32) -> (i32, i32) {
    %c0_i32 = arith.constant 0 : i32
    %c0_i32_0 = arith.constant 0 : i32
    return %arg1, %c0_i32 : i32, i32
  }
  func.func @transform_1(%arg0: i32, %arg1: i32) -> (i32, i32) {
    %c0_i32 = arith.constant 0 : i32
    %c0_i32_0 = arith.constant 0 : i32
    return %c0_i32, %arg0 : i32, i32
  }
  func.func @transform_2(%arg0: i32, %arg1: i32) -> (i32, i32) {
    %c0_i32 = arith.constant 0 : i32
    %c0_i32_0 = arith.constant 0 : i32
    return %c0_i32, %arg0 : i32, i32
  }
  func.func @transform_3(%arg0: i32, %arg1: i32) -> (i32, i32) {
    %c0_i32 = arith.constant 0 : i32
    %c0_i32_0 = arith.constant 0 : i32
    return %c0_i32, %arg0 : i32, i32
  }
  func.func @transform_4(%arg0: i32, %arg1: i32) -> (i32, i32) {
    %c0_i32 = arith.constant 0 : i32
    %c0_i32_0 = arith.constant 0 : i32
    return %c0_i32, %arg0 : i32, i32
  }
  func.func @transform_5(%arg0: i32, %arg1: i32) -> (i32, i32) {
    %c0_i32 = arith.constant 0 : i32
    %c0_i32_0 = arith.constant 0 : i32
    return %c0_i32, %arg0 : i32, i32
  }
  func.func @transform_6(%arg0: i32, %arg1: i32) -> (i32, i32) {
    %c0_i32 = arith.constant 0 : i32
    %c0_i32_0 = arith.constant 0 : i32
    return %c0_i32, %arg0 : i32, i32
  }
  func.func @transform_7(%arg0: i32, %arg1: i32) -> (i32, i32) {
    %c0_i32 = arith.constant 0 : i32
    %c0_i32_0 = arith.constant 0 : i32
    return %c0_i32, %arg0 : i32, i32
  }
  func.func @transform_8(%arg0: i32, %arg1: i32) -> (i32, i32) {
    %c0_i32 = arith.constant 0 : i32
    %c0_i32_0 = arith.constant 0 : i32
    return %c0_i32, %arg0 : i32, i32
  }
  func.func @transform_9(%arg0: i32, %arg1: i32) -> (i32, i32) {
    %c0_i32 = arith.constant 0 : i32
    return %arg1, %arg0 : i32, i32
  }
  func.func @transform_10(%arg0: i32, %arg1: i32) -> (i32, i32) {
    %c0_i32 = arith.constant 0 : i32
    return %arg1, %arg0 : i32, i32
  }
  func.func @transform_11(%arg0: i32, %arg1: i32) -> (i32, i32) {
    %c0_i32 = arith.constant 0 : i32
    return %arg1, %arg0 : i32, i32
  }
  func.func @transform_12(%arg0: i32, %arg1: i32) -> (i32, i32) {
    %c0_i32 = arith.constant 0 : i32
    return %arg1, %arg0 : i32, i32
  }
}

</mosaic_0001>

<llo_original>
// kernel: tpu_custom_call.1
$region0: #{tpu_custom_call.1}
  #allocation0 [shape = 'u32[]', space=smem, size = 0x4, offset = 0x4, fixed_abs, tag = 'smem constant byte address 0x4 - core index']
  #allocation1 [shape = 'u32[144,128]{1,0:T(1,128)}', space=vmem, size = 0x12000, scoped, tag = 'internal scratch']
  %s0 = inlined_call_operand.vmem [shape: f32[96,32], index: 0, kind: input, shape index: {}]
  %s1 = inlined_call_operand.vmem [shape: f32[32,384], index: 1, kind: input, shape index: {}]
  %s2 = inlined_call_operand.hbm [shape: f32[32,384], index: 2, kind: input, shape index: {}]
  %s3 = inlined_call_operand.hbm [shape: f32[32,384], index: 3, kind: input, shape index: {}]
  %s4 = inlined_call_operand.hbm [shape: f32[32,384], index: 4, kind: input, shape index: {}]
  %s5 = inlined_call_operand.vmem [shape: f32[1,384], index: 5, kind: input, shape index: {}]
  %s6 = inlined_call_operand.vmem [shape: f32[1,384], index: 6, kind: input, shape index: {}]
  %s7 = inlined_call_operand.vmem [shape: f32[1,384], index: 7, kind: input, shape index: {}]
  %s8 = inlined_call_operand.vmem [shape: f32[1,384], index: 8, kind: input, shape index: {}]
  %s9 = inlined_call_operand.hbm [shape: f32[96,384], index: 9, kind: output, shape index: {0}]
  %s10 = inlined_call_operand.hbm [shape: f32[96,384], index: 10, kind: output, shape index: {1}]
  %s11 = inlined_call_operand.hbm [shape: f32[96,384], index: 11, kind: output, shape index: {2}]
  %s12 = inlined_call_operand.hbm [shape: f32[96,384], index: 12, kind: output, shape index: {3}]
  %13 = xla_tuple %s9, %s10, %s11, %s12
  %s14 = sld [smem:[#allocation0]]
  $region82: #{tpu_custom_call.1} parent=0
    _
  %s16 = ssub.s32 1, %s14
  %s17 = scalar_select 0, %s16, %s14
  $region1: #{tpu_custom_call.1} parent=0
    #allocation2 [shape = 'u8[49152]{0}', space=vmem, size = 0xc000, scoped, tag = 'input window, operand 2, single buffered']
    #allocation3 [shape = 's32[1]{0}', space=sflag, size = 0x4, scoped, tag = 'scoped memory for tpu_custom_call.1']
    #allocation4 [shape = 's32[1]{0}', space=sflag, size = 0x4, scoped, tag = 'scoped memory for tpu_custom_call.1']
    #allocation5 [shape = 'u8[49152]{0}', space=vmem, size = 0xc000, scoped, tag = 'input window, operand 3, single buffered']
    #allocation6 [shape = 's32[1]{0}', space=sflag, size = 0x4, scoped, tag = 'scoped memory for tpu_custom_call.1']
    #allocation7 [shape = 'u8[49152]{0}', space=vmem, size = 0xc000, scoped, tag = 'input window, operand 4, single buffered']
    #allocation8 [shape = 'u8[147456]{0}', space=vmem, size = 0x24000, scoped, tag = 'output window, operand 0, single buffered']
    #allocation9 [shape = 'u8[147456]{0}', space=vmem, size = 0x24000, scoped, tag = 'output window, operand 1, single buffered']
    #allocation10 [shape = 's32[1]{0}', space=sflag, size = 0x4, scoped, tag = 'scoped memory for tpu_custom_call.1']
    #allocation11 [shape = 'u8[147456]{0}', space=vmem, size = 0x24000, scoped, tag = 'output window, operand 2, single buffered']
    #allocation12 [shape = 'u8[147456]{0}', space=vmem, size = 0x24000, scoped, tag = 'output window, operand 3, single buffered']
    #allocation13 [shape = 's32[1]{0}', space=sflag, size = 0x4, scoped, tag = 'scoped memory for tpu_custom_call.1']
    %18 = vsyncpa [#allocation3], 0
    %19 = vsyncpa [#allocation6], 0
    %20 = vsyncpa [#allocation4], 0
    %21 = vsyncpa [#allocation10], 0
    %22 = vsyncpa [#allocation13], 0
    // Predicated region
    $region2: #{tpu_custom_call.1} parent=1 // pred_check
      _
    $region3: #{tpu_custom_call.1} parent=1 // pred_check_branch
      %24 = sbr.rel (0) target = $region5
    $region4: #{tpu_custom_call.1} parent=1 // pred_region
      _
    $region5: #{tpu_custom_call.1} parent=1 // pred_fallthru
      _
    // Predicated region
    $region6: #{tpu_custom_call.1} parent=1 // pred_check
      _
    $region7: #{tpu_custom_call.1} parent=1 // pred_check_branch
      %26 = sbr.rel (0) target = $region9
    $region8: #{tpu_custom_call.1} parent=1 // pred_region
      _
    $region9: #{tpu_custom_call.1} parent=1 // pred_fallthru
      _
    // Predicated region
    $region10: #{tpu_custom_call.1} parent=1 // pred_check
      _
    $region11: #{tpu_custom_call.1} parent=1 // pred_check_branch
      %28 = sbr.rel (0) target = $region13
    $region12: #{tpu_custom_call.1} parent=1 // pred_region
      %s30 = ssub.s32 1536, 1536
      %31 = vsyncadd [#allocation3], %s30
      %s32 = sshll.u32 [#allocation2], 4
      %s33 = int_to_ptr.vmem [resolvable:$true] %s32
      %38 = dma.hbm_to_vmem [thread:$0]  %s2, 1536, %s33, [#allocation3], 384, 384, 24
    $region13: #{tpu_custom_call.1} parent=1 // pred_fallthru
      _
    // Predicated region
    $region14: #{tpu_custom_call.1} parent=1 // pred_check
      _
    $region15: #{tpu_custom_call.1} parent=1 // pred_check_branch
      %40 = sbr.rel (0) target = $region17
    $region16: #{tpu_custom_call.1} parent=1 // pred_region
      %s42 = ssub.s32 1536, 1536
      %43 = vsyncadd [#allocation6], %s42
      %s44 = sshll.u32 [#allocation5], 4
      %s45 = int_to_ptr.vmem [resolvable:$true] %s44
      %50 = dma.hbm_to_vmem [thread:$0]  %s3, 1536, %s45, [#allocation6], 384, 384, 24
    $region17: #{tpu_custom_call.1} parent=1 // pred_fallthru
      _
    // Predicated region
    $region18: #{tpu_custom_call.1} parent=1 // pred_check
      _
    $region19: #{tpu_custom_call.1} parent=1 // pred_check_branch
      %52 = sbr.rel (0) target = $region21
    $region20: #{tpu_custom_call.1} parent=1 // pred_region
      %s54 = ssub.s32 1536, 1536
      %55 = vsyncadd [#allocation6], %s54
      %s56 = sshll.u32 [#allocation7], 4
      %s57 = int_to_ptr.vmem [resolvable:$true] %s56
      %62 = dma.hbm_to_vmem [thread:$0]  %s4, 1536, %s57, [#allocation6], 384, 384, 24
    $region21: #{tpu_custom_call.1} parent=1 // pred_fallthru
      _
    // Predicated region
    $region22: #{tpu_custom_call.1} parent=1 // pred_check
      _
    $region23: #{tpu_custom_call.1} parent=1 // pred_check_branch
      %64 = sbr.rel (0) target = $region25
    $region24: #{tpu_custom_call.1} parent=1 // pred_region
      _
    $region25: #{tpu_custom_call.1} parent=1 // pred_fallthru
      _
    // Predicated region
    $region26: #{tpu_custom_call.1} parent=1 // pred_check
      _
    $region27: #{tpu_custom_call.1} parent=1 // pred_check_branch
      %66 = sbr.rel (0) target = $region29
    $region28: #{tpu_custom_call.1} parent=1 // pred_region
      _
    $region29: #{tpu_custom_call.1} parent=1 // pred_fallthru
      _
    // Predicated region
    $region30: #{tpu_custom_call.1} parent=1 // pred_check
      _
    $region31: #{tpu_custom_call.1} parent=1 // pred_check_branch
      %68 = sbr.rel (0) target = $region33
    $region32: #{tpu_custom_call.1} parent=1 // pred_region
      _
    $region33: #{tpu_custom_call.1} parent=1 // pred_fallthru
      _
    // Predicated region
    $region34: #{tpu_custom_call.1} parent=1 // pred_check
      _
    $region35: #{tpu_custom_call.1} parent=1 // pred_check_branch
      %70 = sbr.rel (0) target = $region37
    $region36: #{tpu_custom_call.1} parent=1 // pred_region
      _
    $region37: #{tpu_custom_call.1} parent=1 // pred_fallthru
      _
    // Predicated region
    $region38: #{tpu_custom_call.1} parent=1 // pred_check
      _
    $region39: #{tpu_custom_call.1} parent=1 // pred_check_branch
      %72 = sbr.rel (0) target = $region41
    $region40: #{tpu_custom_call.1} parent=1 // pred_region
      %73 = dma.done [#allocation3], 1536
    $region41: #{tpu_custom_call.1} parent=1 // pred_fallthru
      _
    // Predicated region
    $region42: #{tpu_custom_call.1} parent=1 // pred_check
      _
    $region43: #{tpu_custom_call.1} parent=1 // pred_check_branch
      %75 = sbr.rel (0) target = $region45
    $region44: #{tpu_custom_call.1} parent=1 // pred_region
      %76 = dma.done [#allocation6], 1536
    $region45: #{tpu_custom_call.1} parent=1 // pred_fallthru
      _
    // Predicated region
    $region46: #{tpu_custom_call.1} parent=1 // pred_check
      _
    $region47: #{tpu_custom_call.1} parent=1 // pred_check_branch
      %78 = sbr.rel (0) target = $region49
    $region48: #{tpu_custom_call.1} parent=1 // pred_region
      %79 = dma.done [#allocation6], 1536
    $region49: #{tpu_custom_call.1} parent=1 // pred_fallthru
      _
    %v80 = vld [vmem:[%s0] sm:$0xff]
    %v81 = vld [vmem:[%s0 + $0x8] sm:$0xff]
    %v82 = vld [vmem:[%s0 + $0x10] sm:$0xff]
    %v83 = vld [vmem:[%s0 + $0x18] sm:$0xff]
    %v84 = vld [vmem:[%s0 + $0x20] sm:$0xff]
    %v85 = vld [vmem:[%s0 + $0x28] sm:$0xff]
    %v86 = vld [vmem:[%s0 + $0x30] sm:$0xff]
    %v87 = vld [vmem:[%s0 + $0x38] sm:$0xff]
    %v88 = vld [vmem:[%s0 + $0x40] sm:$0xff]
    %v89 = vld [vmem:[%s0 + $0x48] sm:$0xff]
    %v90 = vld [vmem:[%s0 + $0x50] sm:$0xff]
    %v91 = vld [vmem:[%s0 + $0x58] sm:$0xff]
    %v92 = vld [vmem:[%s1] sm:$0xff]
    %v93 = vld [vmem:[%s1 + $0x8] sm:$0xff]
    %v94 = vld [vmem:[%s1 + $0x10] sm:$0xff]
    %v95 = vld [vmem:[%s1 + $0x18] sm:$0xff]
    %v96 = vld [vmem:[%s1 + $0x20] sm:$0xff]
    %v97 = vld [vmem:[%s1 + $0x28] sm:$0xff]
    %v98 = vld [vmem:[%s1 + $0x30] sm:$0xff]
    %v99 = vld [vmem:[%s1 + $0x38] sm:$0xff]
    %v100 = vld [vmem:[%s1 + $0x40] sm:$0xff]
    %v101 = vld [vmem:[%s1 + $0x48] sm:$0xff]
    %v102 = vld [vmem:[%s1 + $0x50] sm:$0xff]
    %v103 = vld [vmem:[%s1 + $0x58] sm:$0xff]
    %v104 = vld [vmem:[%s5] sm:$0x7]
    %v106 = vlaneseq
    %v107 = vshrl.u32 %v106, 7
    %v108 = vsub.s32 0, %v107
    %v109 = vrot.slane %v104, %v108
    %v110 = vlaneseq
    %v111 = vshrl.u32 %v110, 7
    %v112 = vsub.s32 1, %v111
    %v113 = vrot.slane %v104, %v112
    %v114 = vlaneseq
    %v115 = vshrl.u32 %v114, 7
    %v116 = vsub.s32 2, %v115
    %v117 = vrot.slane %v104, %v116
    %vm121 = vcmask 261120
    %v123 = vsel %vm121, %v80, 0
    %v126 = vsel %vm121, %v81, 0
    %v129 = vsel %vm121, %v82, 0
    %v132 = vsel %vm121, %v83, 0
    %v135 = vsel %vm121, %v84, 0
    %v138 = vsel %vm121, %v85, 0
    %v141 = vsel %vm121, %v86, 0
    %v144 = vsel %vm121, %v87, 0
    %v147 = vsel %vm121, %v88, 0
    %v150 = vsel %vm121, %v89, 0
    %v153 = vsel %vm121, %v90, 0
    %v156 = vsel %vm121, %v91, 0
    %158 = vmatprep.subr.mxu0 0.0
    %159 = vmatpush1.msra.mxu0 0.0
    %160 = vmatprep.subr.mxu0 0.0
    %161 = vmatpush1.msra.mxu0 0.0
    %162 = vmatprep.subr.mxu0 0.0
    %163 = vmatpush1.msra.mxu0 0.0
    %164 = vmatprep.subr.mxu0 0.0
    %165 = vmatpush1.msra.mxu0 0.0
    %166 = vmatprep.subr.mxu0 0.0
    %167 = vmatpush1.msra.mxu0 0.0
    %168 = vmatprep.subr.mxu0 0.0
    %169 = vmatpush1.msra.mxu0 0.0
    %170 = vmatprep.subr.mxu0 0.0
    %171 = vmatpush1.msra.mxu0 0.0
    %172 = vmatprep.subr.mxu0 0.0
    %173 = vmatpush1.msra.mxu0 0.0
    %174 = vmatprep.subr.mxu0 0.0
    %175 = vmatpush1.msra.mxu0 0.0
    %176 = vmatprep.subr.mxu0 0.0
    %177 = vmatpush1.msra.mxu0 0.0
    %178 = vmatprep.subr.mxu0 0.0
    %179 = vmatpush1.msra.mxu0 0.0
    %180 = vmatprep.subr.mxu0 0.0
    %181 = vmatpush1.msra.mxu0 0.0
    %182 = vmatprep.subr.mxu0 %v102
    %183 = vmatpush1.msra.mxu0 %v101
    %184 = vmatprep.subr.mxu0 %v99
    %185 = vmatpush1.msra.mxu0 %v98
    %186 = vmatprep.subr.mxu0 %v96
    %187 = vmatpush1.msra.mxu0 %v95
    %188 = vmatprep.subr.mxu0 %v93
    %189 = vmatpush1.msra.mxu0 %v92
    %190 = vmatprep.subr.mxu0 0.0
    %191 = vmatpush2.msra.mxu0 0.0
    %192 = vmatprep.subr.mxu0 0.0
    %193 = vmatpush2.msra.mxu0 0.0
    %194 = vmatprep.subr.mxu0 0.0
    %195 = vmatpush2.msra.mxu0 0.0
    %196 = vmatprep.subr.mxu0 0.0
    %197 = vmatpush2.msra.mxu0 0.0
    %198 = vmatprep.subr.mxu0 0.0
    %199 = vmatpush2.msra.mxu0 0.0
    %200 = vmatprep.subr.mxu0 0.0
    %201 = vmatpush2.msra.mxu0 0.0
    %202 = vmatprep.subr.mxu0 0.0
    %203 = vmatpush2.msra.mxu0 0.0
    %204 = vmatprep.subr.mxu0 0.0
    %205 = vmatpush2.msra.mxu0 0.0
    %206 = vmatprep.subr.mxu0 0.0
    %207 = vmatpush2.msra.mxu0 0.0
    %208 = vmatprep.subr.mxu0 0.0
    %209 = vmatpush2.msra.mxu0 0.0
    %210 = vmatprep.subr.mxu0 0.0
    %211 = vmatpush2.msra.mxu0 0.0
    %212 = vmatprep.subr.mxu0 0.0
    %213 = vmatpush2.msra.mxu0 0.0
    %214 = vmatprep.subr.mxu0 0.0
    %215 = vmatpush2.msra.mxu0 0.0
    %216 = vmatprep.subr.mxu0 0.0
    %217 = vmatpush2.msra.mxu0 0.0
    %218 = vmatprep.subr.mxu0 0.0
    %219 = vmatpush2.msra.mxu0 0.0
    %220 = vmatprep.subr.mxu0 0.0
    %221 = vmatpush2.msra.mxu0 0.0
    %222 = vmatprep.mubr.f32.mxu0 0.0
    %223 = vmatmul.mubr.f32.gmra.mxu0 %v123
    %v224 = vpop.f32.mrf.mxu0
    %v225 = vadd.f32 %v109, %v224
    %v226 = vpop.f32.mrf.mxu0
    %v227 = vadd.f32 %v113, %v226
    %228 = vmatprep.mubr.f32.mxu0 0.0
    %229 = vmatmul.mubr.f32.gmra.mxu0 %v126
    %v230 = vpop.f32.mrf.mxu0
    %v231 = vadd.f32 %v109, %v230
    %v232 = vpop.f32.mrf.mxu0
    %v233 = vadd.f32 %v113, %v232
    %234 = vmatprep.mubr.f32.mxu0 0.0
    %235 = vmatmul.mubr.f32.gmra.mxu0 %v129
    %v236 = vpop.f32.mrf.mxu0
    %v237 = vadd.f32 %v109, %v236
    %v238 = vpop.f32.mrf.mxu0
    %v239 = vadd.f32 %v113, %v238
    %240 = vmatprep.mubr.f32.mxu0 0.0
    %241 = vmatmul.mubr.f32.gmra.mxu0 %v132
    %v242 = vpop.f32.mrf.mxu0
    %v243 = vadd.f32 %v109, %v242
    %v244 = vpop.f32.mrf.mxu0
    %v245 = vadd.f32 %v113, %v244
    %246 = vmatprep.mubr.f32.mxu0 0.0
    %247 = vmatmul.mubr.f32.gmra.mxu0 %v135
    %v248 = vpop.f32.mrf.mxu0
    %v249 = vadd.f32 %v109, %v248
    %v250 = vpop.f32.mrf.mxu0
    %v251 = vadd.f32 %v113, %v250
    %252 = vmatprep.mubr.f32.mxu0 0.0
    %253 = vmatmul.mubr.f32.gmra.mxu0 %v138
    %v254 = vpop.f32.mrf.mxu0
    %v255 = vadd.f32 %v109, %v254
    %v256 = vpop.f32.mrf.mxu0
    %v257 = vadd.f32 %v113, %v256
    %258 = vmatprep.mubr.f32.mxu0 0.0
    %259 = vmatmul.mubr.f32.gmra.mxu0 %v141
    %v260 = vpop.f32.mrf.mxu0
    %v261 = vadd.f32 %v109, %v260
    %v262 = vpop.f32.mrf.mxu0
    %v263 = vadd.f32 %v113, %v262
    %264 = vmatprep.mubr.f32.mxu0 0.0
    %265 = vmatmul.mubr.f32.gmra.mxu0 %v144
    %v266 = vpop.f32.mrf.mxu0
    %v267 = vadd.f32 %v109, %v266
    %v268 = vpop.f32.mrf.mxu0
    %v269 = vadd.f32 %v113, %v268
    %270 = vmatprep.mubr.f32.mxu0 0.0
    %271 = vmatmul.mubr.f32.gmra.mxu0 %v147
    %v272 = vpop.f32.mrf.mxu0
    %v273 = vadd.f32 %v109, %v272
    %v274 = vpop.f32.mrf.mxu0
    %v275 = vadd.f32 %v113, %v274
    %276 = vmatprep.mubr.f32.mxu0 0.0
    %277 = vmatmul.mubr.f32.gmra.mxu0 %v150
    %v278 = vpop.f32.mrf.mxu0
    %v279 = vadd.f32 %v109, %v278
    %v280 = vpop.f32.mrf.mxu0
    %v281 = vadd.f32 %v113, %v280
    %282 = vmatprep.mubr.f32.mxu0 0.0
    %283 = vmatmul.mubr.f32.gmra.mxu0 %v153
    %v284 = vpop.f32.mrf.mxu0
    %v285 = vadd.f32 %v109, %v284
    %v286 = vpop.f32.mrf.mxu0
    %v287 = vadd.f32 %v113, %v286
    %288 = vmatprep.mubr.f32.mxu0 0.0
    %289 = vmatmul.mubr.f32.gmra.mxu0 %v156
    %v290 = vpop.f32.mrf.mxu0
    %v291 = vadd.f32 %v109, %v290
    %v292 = vpop.f32.mrf.mxu0
    %v293 = vadd.f32 %v113, %v292
    %294 = vdwg.mxu0
    %295 = vmatprep.subr.mxu0 0.0
    %296 = vmatpush1.msra.mxu0 0.0
    %297 = vmatprep.subr.mxu0 0.0
    %298 = vmatpush1.msra.mxu0 0.0
    %299 = vmatprep.subr.mxu0 0.0
    %300 = vmatpush1.msra.mxu0 0.0
    %301 = vmatprep.subr.mxu0 0.0
    %302 = vmatpush1.msra.mxu0 0.0
    %303 = vmatprep.subr.mxu0 0.0
    %304 = vmatpush1.msra.mxu0 0.0
    %305 = vmatprep.subr.mxu0 0.0
    %306 = vmatpush1.msra.mxu0 0.0
    %307 = vmatprep.subr.mxu0 0.0
    %308 = vmatpush1.msra.mxu0 0.0
    %309 = vmatprep.subr.mxu0 0.0
    %310 = vmatpush1.msra.mxu0 0.0
    %311 = vmatprep.subr.mxu0 0.0
    %312 = vmatpush1.msra.mxu0 0.0
    %313 = vmatprep.subr.mxu0 0.0
    %314 = vmatpush1.msra.mxu0 0.0
    %315 = vmatprep.subr.mxu0 0.0
    %316 = vmatpush1.msra.mxu0 0.0
    %317 = vmatprep.subr.mxu0 0.0
    %318 = vmatpush1.msra.mxu0 0.0
    %319 = vmatprep.subr.mxu0 0.0
    %320 = vmatpush1.msra.mxu0 %v103
    %321 = vmatprep.subr.mxu0 0.0
    %322 = vmatpush1.msra.mxu0 %v100
    %323 = vmatprep.subr.mxu0 0.0
    %324 = vmatpush1.msra.mxu0 %v97
    %325 = vmatprep.subr.mxu0 0.0
    %326 = vmatpush1.msra.mxu0 %v94
    %327 = vmatprep.subr.mxu0 0.0
    %328 = vmatpush2.msra.mxu0 0.0
    %329 = vmatprep.subr.mxu0 0.0
    %330 = vmatpush2.msra.mxu0 0.0
    %331 = vmatprep.subr.mxu0 0.0
    %332 = vmatpush2.msra.mxu0 0.0
    %333 = vmatprep.subr.mxu0 0.0
    %334 = vmatpush2.msra.mxu0 0.0
    %335 = vmatprep.subr.mxu0 0.0
    %336 = vmatpush2.msra.mxu0 0.0
    %337 = vmatprep.subr.mxu0 0.0
    %338 = vmatpush2.msra.mxu0 0.0
    %339 = vmatprep.subr.mxu0 0.0
    %340 = vmatpush2.msra.mxu0 0.0
    %341 = vmatprep.subr.mxu0 0.0
    %342 = vmatpush2.msra.mxu0 0.0
    %343 = vmatprep.subr.mxu0 0.0
    %344 = vmatpush2.msra.mxu0 0.0
    %345 = vmatprep.subr.mxu0 0.0
    %346 = vmatpush2.msra.mxu0 0.0
    %347 = vmatprep.subr.mxu0 0.0
    %348 = vmatpush2.msra.mxu0 0.0
    %349 = vmatprep.subr.mxu0 0.0
    %350 = vmatpush2.msra.mxu0 0.0
    %351 = vmatprep.subr.mxu0 0.0
    %352 = vmatpush2.msra.mxu0 0.0
    %353 = vmatprep.subr.mxu0 0.0
    %354 = vmatpush2.msra.mxu0 0.0
    %355 = vmatprep.subr.mxu0 0.0
    %356 = vmatpush2.msra.mxu0 0.0
    %357 = vmatprep.subr.mxu0 0.0
    %358 = vmatpush2.msra.mxu0 0.0
    %359 = vmatprep.mubr.f32.mxu0 0.0
    %360 = vmatmul.mubr.f32.gmra.mxu0 %v123
    %v361 = vpop.f32.mrf.mxu0
    %v362 = vadd.f32 %v117, %v361
    %v363 = vpop.f32.mrf.mxu0
    %364 = vmatprep.mubr.f32.mxu0 0.0
    %365 = vmatmul.mubr.f32.gmra.mxu0 %v126
    %v366 = vpop.f32.mrf.mxu0
    %v367 = vadd.f32 %v117, %v366
    %v368 = vpop.f32.mrf.mxu0
    %369 = vmatprep.mubr.f32.mxu0 0.0
    %370 = vmatmul.mubr.f32.gmra.mxu0 %v129
    %v371 = vpop.f32.mrf.mxu0
    %v372 = vadd.f32 %v117, %v371
    %v373 = vpop.f32.mrf.mxu0
    %374 = vmatprep.mubr.f32.mxu0 0.0
    %375 = vmatmul.mubr.f32.gmra.mxu0 %v132
    %v376 = vpop.f32.mrf.mxu0
    %v377 = vadd.f32 %v117, %v376
    %v378 = vpop.f32.mrf.mxu0
    %379 = vmatprep.mubr.f32.mxu0 0.0
    %380 = vmatmul.mubr.f32.gmra.mxu0 %v135
    %v381 = vpop.f32.mrf.mxu0
    %v382 = vadd.f32 %v117, %v381
    %v383 = vpop.f32.mrf.mxu0
    %384 = vmatprep.mubr.f32.mxu0 0.0
    %385 = vmatmul.mubr.f32.gmra.mxu0 %v138
    %v386 = vpop.f32.mrf.mxu0
    %v387 = vadd.f32 %v117, %v386
    %v388 = vpop.f32.mrf.mxu0
    %389 = vmatprep.mubr.f32.mxu0 0.0
    %390 = vmatmul.mubr.f32.gmra.mxu0 %v141
    %v391 = vpop.f32.mrf.mxu0
    %v392 = vadd.f32 %v117, %v391
    %v393 = vpop.f32.mrf.mxu0
    %394 = vmatprep.mubr.f32.mxu0 0.0
    %395 = vmatmul.mubr.f32.gmra.mxu0 %v144
    %v396 = vpop.f32.mrf.mxu0
    %v397 = vadd.f32 %v117, %v396
    %v398 = vpop.f32.mrf.mxu0
    %399 = vmatprep.mubr.f32.mxu0 0.0
    %400 = vmatmul.mubr.f32.gmra.mxu0 %v147
    %v401 = vpop.f32.mrf.mxu0
    %v402 = vadd.f32 %v117, %v401
    %v403 = vpop.f32.mrf.mxu0
    %404 = vmatprep.mubr.f32.mxu0 0.0
    %405 = vmatmul.mubr.f32.gmra.mxu0 %v150
    %v406 = vpop.f32.mrf.mxu0
    %v407 = vadd.f32 %v117, %v406
    %v408 = vpop.f32.mrf.mxu0
    %409 = vmatprep.mubr.f32.mxu0 0.0
    %410 = vmatmul.mubr.f32.gmra.mxu0 %v153
    %v411 = vpop.f32.mrf.mxu0
    %v412 = vadd.f32 %v117, %v411
    %v413 = vpop.f32.mrf.mxu0
    %414 = vmatprep.mubr.f32.mxu0 0.0
    %415 = vmatmul.mubr.f32.gmra.mxu0 %v156
    %v416 = vpop.f32.mrf.mxu0
    %v417 = vadd.f32 %v117, %v416
    %v418 = vpop.f32.mrf.mxu0
    %419 = vdwg.mxu0
    %v420 = vmul.f32 %v225, 1.442695
    %v421 = vpow.pop %v420
    %v422 = vmul.f32 %v227, 1.442695
    %v423 = vpow.pop %v422
    %v424 = vmul.f32 %v362, 1.442695
    %v425 = vpow.pop %v424
    %v426 = vmul.f32 %v231, 1.442695
    %v427 = vpow.pop %v426
    %v428 = vmul.f32 %v233, 1.442695
    %v429 = vpow.pop %v428
    %v430 = vmul.f32 %v367, 1.442695
    %v431 = vpow.pop %v430
    %v432 = vmul.f32 %v237, 1.442695
    %v433 = vpow.pop %v432
    %v434 = vmul.f32 %v239, 1.442695
    %v435 = vpow.pop %v434
    %v436 = vmul.f32 %v372, 1.442695
    %v437 = vpow.pop %v436
    %v438 = vmul.f32 %v243, 1.442695
    %v439 = vpow.pop %v438
    %v440 = vmul.f32 %v245, 1.442695
    %v441 = vpow.pop %v440
    %v442 = vmul.f32 %v377, 1.442695
    %v443 = vpow.pop %v442
    %v444 = vmul.f32 %v249, 1.442695
    %v445 = vpow.pop %v444
    %v446 = vmul.f32 %v251, 1.442695
    %v447 = vpow.pop %v446
    %v448 = vmul.f32 %v382, 1.442695
    %v449 = vpow.pop %v448
    %v450 = vmul.f32 %v255, 1.442695
    %v451 = vpow.pop %v450
    %v452 = vmul.f32 %v257, 1.442695
    %v453 = vpow.pop %v452
    %v454 = vmul.f32 %v387, 1.442695
    %v455 = vpow.pop %v454
    %v456 = vmul.f32 %v261, 1.442695
    %v457 = vpow.pop %v456
    %v458 = vmul.f32 %v263, 1.442695
    %v459 = vpow.pop %v458
    %v460 = vmul.f32 %v392, 1.442695
    %v461 = vpow.pop %v460
    %v462 = vmul.f32 %v267, 1.442695
    %v463 = vpow.pop %v462
    %v464 = vmul.f32 %v269, 1.442695
    %v465 = vpow.pop %v464
    %v466 = vmul.f32 %v397, 1.442695
    %v467 = vpow.pop %v466
    %v468 = vmul.f32 %v273, 1.442695
    %v469 = vpow.pop %v468
    %v470 = vmul.f32 %v275, 1.442695
    %v471 = vpow.pop %v470
    %v472 = vmul.f32 %v402, 1.442695
    %v473 = vpow.pop %v472
    %v474 = vmul.f32 %v279, 1.442695
    %v475 = vpow.pop %v474
    %v476 = vmul.f32 %v281, 1.442695
    %v477 = vpow.pop %v476
    %v478 = vmul.f32 %v407, 1.442695
    %v479 = vpow.pop %v478
    %v480 = vmul.f32 %v285, 1.442695
    %v481 = vpow.pop %v480
    %v482 = vmul.f32 %v287, 1.442695
    %v483 = vpow.pop %v482
    %v484 = vmul.f32 %v412, 1.442695
    %v485 = vpow.pop %v484
    %v486 = vmul.f32 %v291, 1.442695
    %v487 = vpow.pop %v486
    %v488 = vmul.f32 %v293, 1.442695
    %v489 = vpow.pop %v488
    %v490 = vmul.f32 %v417, 1.442695
    %v491 = vpow.pop %v490
    %v492 = vadd.f32 %v421, 1e-06
    %v493 = vadd.f32 %v423, 1e-06
    %v494 = vadd.f32 %v425, 1e-06
    %v495 = vadd.f32 %v427, 1e-06
    %v496 = vadd.f32 %v429, 1e-06
    %v497 = vadd.f32 %v431, 1e-06
    %v498 = vadd.f32 %v433, 1e-06
    %v499 = vadd.f32 %v435, 1e-06
    %v500 = vadd.f32 %v437, 1e-06
    %v501 = vadd.f32 %v439, 1e-06
    %v502 = vadd.f32 %v441, 1e-06
    %v503 = vadd.f32 %v443, 1e-06
    %v504 = vadd.f32 %v445, 1e-06
    %v505 = vadd.f32 %v447, 1e-06
    %v506 = vadd.f32 %v449, 1e-06
    %v507 = vadd.f32 %v451, 1e-06
    %v508 = vadd.f32 %v453, 1e-06
    %v509 = vadd.f32 %v455, 1e-06
    %v510 = vadd.f32 %v457, 1e-06
    %v511 = vadd.f32 %v459, 1e-06
    %v512 = vadd.f32 %v461, 1e-06
    %v513 = vadd.f32 %v463, 1e-06
    %v514 = vadd.f32 %v465, 1e-06
    %v515 = vadd.f32 %v467, 1e-06
    %v516 = vadd.f32 %v469, 1e-06
    %v517 = vadd.f32 %v471, 1e-06
    %v518 = vadd.f32 %v473, 1e-06
    %v519 = vadd.f32 %v475, 1e-06
    %v520 = vadd.f32 %v477, 1e-06
    %v521 = vadd.f32 %v479, 1e-06
    %v522 = vadd.f32 %v481, 1e-06
    %v523 = vadd.f32 %v483, 1e-06
    %v524 = vadd.f32 %v485, 1e-06
    %v525 = vadd.f32 %v487, 1e-06
    %v526 = vadd.f32 %v489, 1e-06
    %v527 = vadd.f32 %v491, 1e-06
    %528 = vst [vmem:[#allocation8] sm:$0xff] %v492
    %529 = vst [vmem:[#allocation8 + $0x8] sm:$0xff] %v493
    %530 = vst [vmem:[#allocation8 + $0x10] sm:$0xff] %v494
    %531 = vst [vmem:[#allocation8 + $0x18] sm:$0xff] %v495
    %532 = vst [vmem:[#allocation8 + $0x20] sm:$0xff] %v496
    %533 = vst [vmem:[#allocation8 + $0x28] sm:$0xff] %v497
    %534 = vst [vmem:[#allocation8 + $0x30] sm:$0xff] %v498
    %535 = vst [vmem:[#allocation8 + $0x38] sm:$0xff] %v499
    %536 = vst [vmem:[#allocation8 + $0x40] sm:$0xff] %v500
    %537 = vst [vmem:[#allocation8 + $0x48] sm:$0xff] %v501
    %538 = vst [vmem:[#allocation8 + $0x50] sm:$0xff] %v502
    %539 = vst [vmem:[#allocation8 + $0x58] sm:$0xff] %v503
    %540 = vst [vmem:[#allocation8 + $0x60] sm:$0xff] %v504
    %541 = vst [vmem:[#allocation8 + $0x68] sm:$0xff] %v505
    %542 = vst [vmem:[#allocation8 + $0x70] sm:$0xff] %v506
    %543 = vst [vmem:[#allocation8 + $0x78] sm:$0xff] %v507
    %544 = vst [vmem:[#allocation8 + $0x80] sm:$0xff] %v508
    %545 = vst [vmem:[#allocation8 + $0x88] sm:$0xff] %v509
    %546 = vst [vmem:[#allocation8 + $0x90] sm:$0xff] %v510
    %547 = vst [vmem:[#allocation8 + $0x98] sm:$0xff] %v511
    %548 = vst [vmem:[#allocation8 + $0xa0] sm:$0xff] %v512
    %549 = vst [vmem:[#allocation8 + $0xa8] sm:$0xff] %v513
    %550 = vst [vmem:[#allocation8 + $0xb0] sm:$0xff] %v514
    %551 = vst [vmem:[#allocation8 + $0xb8] sm:$0xff] %v515
    %552 = vst [vmem:[#allocation8 + $0xc0] sm:$0xff] %v516
    %553 = vst [vmem:[#allocation8 + $0xc8] sm:$0xff] %v517
    %554 = vst [vmem:[#allocation8 + $0xd0] sm:$0xff] %v518
    %555 = vst [vmem:[#allocation8 + $0xd8] sm:$0xff] %v519
    %556 = vst [vmem:[#allocation8 + $0xe0] sm:$0xff] %v520
    %557 = vst [vmem:[#allocation8 + $0xe8] sm:$0xff] %v521
    %558 = vst [vmem:[#allocation8 + $0xf0] sm:$0xff] %v522
    %559 = vst [vmem:[#allocation8 + $0xf8] sm:$0xff] %v523
    %560 = vst [vmem:[#allocation8 + $0x100] sm:$0xff] %v524
    %561 = vst [vmem:[#allocation8 + $0x108] sm:$0xff] %v525
    %562 = vst [vmem:[#allocation8 + $0x110] sm:$0xff] %v526
    %563 = vst [vmem:[#allocation8 + $0x118] sm:$0xff] %v527
    %v564 = vld [vmem:[#allocation2] sm:$0xff]
    %v565 = vld [vmem:[#allocation2 + $0x8] sm:$0xff]
    %v566 = vld [vmem:[#allocation2 + $0x10] sm:$0xff]
    %v567 = vld [vmem:[#allocation2 + $0x18] sm:$0xff]
    %v568 = vld [vmem:[#allocation2 + $0x20] sm:$0xff]
    %v569 = vld [vmem:[#allocation2 + $0x28] sm:$0xff]
    %v570 = vld [vmem:[#allocation2 + $0x30] sm:$0xff]
    %v571 = vld [vmem:[#allocation2 + $0x38] sm:$0xff]
    %v572 = vld [vmem:[#allocation2 + $0x40] sm:$0xff]
    %v573 = vld [vmem:[#allocation2 + $0x48] sm:$0xff]
    %v574 = vld [vmem:[#allocation2 + $0x50] sm:$0xff]
    %v575 = vld [vmem:[#allocation2 + $0x58] sm:$0xff]
    %v576 = vld [vmem:[%s6] sm:$0x7]
    %v578 = vlaneseq
    %v579 = vshrl.u32 %v578, 7
    %v580 = vsub.s32 0, %v579
    %v581 = vrot.slane %v576, %v580
    %v582 = vlaneseq
    %v583 = vshrl.u32 %v582, 7
    %v584 = vsub.s32 1, %v583
    %v585 = vrot.slane %v576, %v584
    %v586 = vlaneseq
    %v587 = vshrl.u32 %v586, 7
    %v588 = vsub.s32 2, %v587
    %v589 = vrot.slane %v576, %v588
    %593 = vmatprep.subr.mxu0 0.0
    %594 = vmatpush1.msra.mxu0 0.0
    %595 = vmatprep.subr.mxu0 0.0
    %596 = vmatpush1.msra.mxu0 0.0
    %597 = vmatprep.subr.mxu0 0.0
    %598 = vmatpush1.msra.mxu0 0.0
    %599 = vmatprep.subr.mxu0 0.0
    %600 = vmatpush1.msra.mxu0 0.0
    %601 = vmatprep.subr.mxu0 0.0
    %602 = vmatpush1.msra.mxu0 0.0
    %603 = vmatprep.subr.mxu0 0.0
    %604 = vmatpush1.msra.mxu0 0.0
    %605 = vmatprep.subr.mxu0 0.0
    %606 = vmatpush1.msra.mxu0 0.0
    %607 = vmatprep.subr.mxu0 0.0
    %608 = vmatpush1.msra.mxu0 0.0
    %609 = vmatprep.subr.mxu0 0.0
    %610 = vmatpush1.msra.mxu0 0.0
    %611 = vmatprep.subr.mxu0 0.0
    %612 = vmatpush1.msra.mxu0 0.0
    %613 = vmatprep.subr.mxu0 0.0
    %614 = vmatpush1.msra.mxu0 0.0
    %615 = vmatprep.subr.mxu0 0.0
    %616 = vmatpush1.msra.mxu0 0.0
    %617 = vmatprep.subr.mxu0 %v574
    %618 = vmatpush1.msra.mxu0 %v573
    %619 = vmatprep.subr.mxu0 %v571
    %620 = vmatpush1.msra.mxu0 %v570
    %621 = vmatprep.subr.mxu0 %v568
    %622 = vmatpush1.msra.mxu0 %v567
    %623 = vmatprep.subr.mxu0 %v565
    %624 = vmatpush1.msra.mxu0 %v564
    %625 = vmatprep.subr.mxu0 0.0
    %626 = vmatpush2.msra.mxu0 0.0
    %627 = vmatprep.subr.mxu0 0.0
    %628 = vmatpush2.msra.mxu0 0.0
    %629 = vmatprep.subr.mxu0 0.0
    %630 = vmatpush2.msra.mxu0 0.0
    %631 = vmatprep.subr.mxu0 0.0
    %632 = vmatpush2.msra.mxu0 0.0
    %633 = vmatprep.subr.mxu0 0.0
    %634 = vmatpush2.msra.mxu0 0.0
    %635 = vmatprep.subr.mxu0 0.0
    %636 = vmatpush2.msra.mxu0 0.0
    %637 = vmatprep.subr.mxu0 0.0
    %638 = vmatpush2.msra.mxu0 0.0
    %639 = vmatprep.subr.mxu0 0.0
    %640 = vmatpush2.msra.mxu0 0.0
    %641 = vmatprep.subr.mxu0 0.0
    %642 = vmatpush2.msra.mxu0 0.0
    %643 = vmatprep.subr.mxu0 0.0
    %644 = vmatpush2.msra.mxu0 0.0
    %645 = vmatprep.subr.mxu0 0.0
    %646 = vmatpush2.msra.mxu0 0.0
    %647 = vmatprep.subr.mxu0 0.0
    %648 = vmatpush2.msra.mxu0 0.0
    %649 = vmatprep.subr.mxu0 0.0
    %650 = vmatpush2.msra.mxu0 0.0
    %651 = vmatprep.subr.mxu0 0.0
    %652 = vmatpush2.msra.mxu0 0.0
    %653 = vmatprep.subr.mxu0 0.0
    %654 = vmatpush2.msra.mxu0 0.0
    %655 = vmatprep.subr.mxu0 0.0
    %656 = vmatpush2.msra.mxu0 0.0
    %657 = vmatprep.mubr.f32.mxu0 0.0
    %658 = vmatmul.mubr.f32.gmra.mxu0 %v123
    %v659 = vpop.f32.mrf.mxu0
    %v660 = vadd.f32 %v581, %v659
    %v661 = vpop.f32.mrf.mxu0
    %v662 = vadd.f32 %v585, %v661
    %663 = vmatprep.mubr.f32.mxu0 0.0
    %664 = vmatmul.mubr.f32.gmra.mxu0 %v126
    %v665 = vpop.f32.mrf.mxu0
    %v666 = vadd.f32 %v581, %v665
    %v667 = vpop.f32.mrf.mxu0
    %v668 = vadd.f32 %v585, %v667
    %669 = vmatprep.mubr.f32.mxu0 0.0
    %670 = vmatmul.mubr.f32.gmra.mxu0 %v129
    %v671 = vpop.f32.mrf.mxu0
    %v672 = vadd.f32 %v581, %v671
    %v673 = vpop.f32.mrf.mxu0
    %v674 = vadd.f32 %v585, %v673
    %675 = vmatprep.mubr.f32.mxu0 0.0
    %676 = vmatmul.mubr.f32.gmra.mxu0 %v132
    %v677 = vpop.f32.mrf.mxu0
    %v678 = vadd.f32 %v581, %v677
    %v679 = vpop.f32.mrf.mxu0
    %v680 = vadd.f32 %v585, %v679
    %681 = vmatprep.mubr.f32.mxu0 0.0
    %682 = vmatmul.mubr.f32.gmra.mxu0 %v135
    %v683 = vpop.f32.mrf.mxu0
    %v684 = vadd.f32 %v581, %v683
    %v685 = vpop.f32.mrf.mxu0
    %v686 = vadd.f32 %v585, %v685
    %687 = vmatprep.mubr.f32.mxu0 0.0
    %688 = vmatmul.mubr.f32.gmra.mxu0 %v138
    %v689 = vpop.f32.mrf.mxu0
    %v690 = vadd.f32 %v581, %v689
    %v691 = vpop.f32.mrf.mxu0
    %v692 = vadd.f32 %v585, %v691
    %693 = vmatprep.mubr.f32.mxu0 0.0
    %694 = vmatmul.mubr.f32.gmra.mxu0 %v141
    %v695 = vpop.f32.mrf.mxu0
    %v696 = vadd.f32 %v581, %v695
    %v697 = vpop.f32.mrf.mxu0
    %v698 = vadd.f32 %v585, %v697
    %699 = vmatprep.mubr.f32.mxu0 0.0
    %700 = vmatmul.mubr.f32.gmra.mxu0 %v144
    %v701 = vpop.f32.mrf.mxu0
    %v702 = vadd.f32 %v581, %v701
    %v703 = vpop.f32.mrf.mxu0
    %v704 = vadd.f32 %v585, %v703
    %705 = vmatprep.mubr.f32.mxu0 0.0
    %706 = vmatmul.mubr.f32.gmra.mxu0 %v147
    %v707 = vpop.f32.mrf.mxu0
    %v708 = vadd.f32 %v581, %v707
    %v709 = vpop.f32.mrf.mxu0
    %v710 = vadd.f32 %v585, %v709
    %711 = vmatprep.mubr.f32.mxu0 0.0
    %712 = vmatmul.mubr.f32.gmra.mxu0 %v150
    %v713 = vpop.f32.mrf.mxu0
    %v714 = vadd.f32 %v581, %v713
    %v715 = vpop.f32.mrf.mxu0
    %v716 = vadd.f32 %v585, %v715
    %717 = vmatprep.mubr.f32.mxu0 0.0
    %718 = vmatmul.mubr.f32.gmra.mxu0 %v153
    %v719 = vpop.f32.mrf.mxu0
    %v720 = vadd.f32 %v581, %v719
    %v721 = vpop.f32.mrf.mxu0
    %v722 = vadd.f32 %v585, %v721
    %723 = vmatprep.mubr.f32.mxu0 0.0
    %724 = vmatmul.mubr.f32.gmra.mxu0 %v156
    %v725 = vpop.f32.mrf.mxu0
    %v726 = vadd.f32 %v581, %v725
    %v727 = vpop.f32.mrf.mxu0
    %v728 = vadd.f32 %v585, %v727
    %729 = vdwg.mxu0
    %730 = vmatprep.subr.mxu0 0.0
    %731 = vmatpush1.msra.mxu0 0.0
    %732 = vmatprep.subr.mxu0 0.0
    %733 = vmatpush1.msra.mxu0 0.0
    %734 = vmatprep.subr.mxu0 0.0
    %735 = vmatpush1.msra.mxu0 0.0
    %736 = vmatprep.subr.mxu0 0.0
    %737 = vmatpush1.msra.mxu0 0.0
    %738 = vmatprep.subr.mxu0 0.0
    %739 = vmatpush1.msra.mxu0 0.0
    %740 = vmatprep.subr.mxu0 0.0
    %741 = vmatpush1.msra.mxu0 0.0
    %742 = vmatprep.subr.mxu0 0.0
    %743 = vmatpush1.msra.mxu0 0.0
    %744 = vmatprep.subr.mxu0 0.0
    %745 = vmatpush1.msra.mxu0 0.0
    %746 = vmatprep.subr.mxu0 0.0
    %747 = vmatpush1.msra.mxu0 0.0
    %748 = vmatprep.subr.mxu0 0.0
    %749 = vmatpush1.msra.mxu0 0.0
    %750 = vmatprep.subr.mxu0 0.0
    %751 = vmatpush1.msra.mxu0 0.0
    %752 = vmatprep.subr.mxu0 0.0
    %753 = vmatpush1.msra.mxu0 0.0
    %754 = vmatprep.subr.mxu0 0.0
    %755 = vmatpush1.msra.mxu0 %v575
    %756 = vmatprep.subr.mxu0 0.0
    %757 = vmatpush1.msra.mxu0 %v572
    %758 = vmatprep.subr.mxu0 0.0
    %759 = vmatpush1.msra.mxu0 %v569
    %760 = vmatprep.subr.mxu0 0.0
    %761 = vmatpush1.msra.mxu0 %v566
    %762 = vmatprep.subr.mxu0 0.0
    %763 = vmatpush2.msra.mxu0 0.0
    %764 = vmatprep.subr.mxu0 0.0
    %765 = vmatpush2.msra.mxu0 0.0
    %766 = vmatprep.subr.mxu0 0.0
    %767 = vmatpush2.msra.mxu0 0.0
    %768 = vmatprep.subr.mxu0 0.0
    %769 = vmatpush2.msra.mxu0 0.0
    %770 = vmatprep.subr.mxu0 0.0
    %771 = vmatpush2.msra.mxu0 0.0
    %772 = vmatprep.subr.mxu0 0.0
    %773 = vmatpush2.msra.mxu0 0.0
    %774 = vmatprep.subr.mxu0 0.0
    %775 = vmatpush2.msra.mxu0 0.0
    %776 = vmatprep.subr.mxu0 0.0
    %777 = vmatpush2.msra.mxu0 0.0
    %778 = vmatprep.subr.mxu0 0.0
    %779 = vmatpush2.msra.mxu0 0.0
    %780 = vmatprep.subr.mxu0 0.0
    %781 = vmatpush2.msra.mxu0 0.0
    %782 = vmatprep.subr.mxu0 0.0
    %783 = vmatpush2.msra.mxu0 0.0
    %784 = vmatprep.subr.mxu0 0.0
    %785 = vmatpush2.msra.mxu0 0.0
    %786 = vmatprep.subr.mxu0 0.0
    %787 = vmatpush2.msra.mxu0 0.0
    %788 = vmatprep.subr.mxu0 0.0
    %789 = vmatpush2.msra.mxu0 0.0
    %790 = vmatprep.subr.mxu0 0.0
    %791 = vmatpush2.msra.mxu0 0.0
    %792 = vmatprep.subr.mxu0 0.0
    %793 = vmatpush2.msra.mxu0 0.0
    %794 = vmatprep.mubr.f32.mxu0 0.0
    %795 = vmatmul.mubr.f32.gmra.mxu0 %v123
    %v796 = vpop.f32.mrf.mxu0
    %v797 = vadd.f32 %v589, %v796
    %v798 = vpop.f32.mrf.mxu0
    %799 = vmatprep.mubr.f32.mxu0 0.0
    %800 = vmatmul.mubr.f32.gmra.mxu0 %v126
    %v801 = vpop.f32.mrf.mxu0
    %v802 = vadd.f32 %v589, %v801
    %v803 = vpop.f32.mrf.mxu0
    %804 = vmatprep.mubr.f32.mxu0 0.0
    %805 = vmatmul.mubr.f32.gmra.mxu0 %v129
    %v806 = vpop.f32.mrf.mxu0
    %v807 = vadd.f32 %v589, %v806
    %v808 = vpop.f32.mrf.mxu0
    %809 = vmatprep.mubr.f32.mxu0 0.0
    %810 = vmatmul.mubr.f32.gmra.mxu0 %v132
    %v811 = vpop.f32.mrf.mxu0
    %v812 = vadd.f32 %v589, %v811
    %v813 = vpop.f32.mrf.mxu0
    %814 = vmatprep.mubr.f32.mxu0 0.0
    %815 = vmatmul.mubr.f32.gmra.mxu0 %v135
    %v816 = vpop.f32.mrf.mxu0
    %v817 = vadd.f32 %v589, %v816
    %v818 = vpop.f32.mrf.mxu0
    %819 = vmatprep.mubr.f32.mxu0 0.0
    %820 = vmatmul.mubr.f32.gmra.mxu0 %v138
    %v821 = vpop.f32.mrf.mxu0
    %v822 = vadd.f32 %v589, %v821
    %v823 = vpop.f32.mrf.mxu0
    %824 = vmatprep.mubr.f32.mxu0 0.0
    %825 = vmatmul.mubr.f32.gmra.mxu0 %v141
    %v826 = vpop.f32.mrf.mxu0
    %v827 = vadd.f32 %v589, %v826
    %v828 = vpop.f32.mrf.mxu0
    %829 = vmatprep.mubr.f32.mxu0 0.0
    %830 = vmatmul.mubr.f32.gmra.mxu0 %v144
    %v831 = vpop.f32.mrf.mxu0
    %v832 = vadd.f32 %v589, %v831
    %v833 = vpop.f32.mrf.mxu0
    %834 = vmatprep.mubr.f32.mxu0 0.0
    %835 = vmatmul.mubr.f32.gmra.mxu0 %v147
    %v836 = vpop.f32.mrf.mxu0
    %v837 = vadd.f32 %v589, %v836
    %v838 = vpop.f32.mrf.mxu0
    %839 = vmatprep.mubr.f32.mxu0 0.0
    %840 = vmatmul.mubr.f32.gmra.mxu0 %v150
    %v841 = vpop.f32.mrf.mxu0
    %v842 = vadd.f32 %v589, %v841
    %v843 = vpop.f32.mrf.mxu0
    %844 = vmatprep.mubr.f32.mxu0 0.0
    %845 = vmatmul.mubr.f32.gmra.mxu0 %v153
    %v846 = vpop.f32.mrf.mxu0
    %v847 = vadd.f32 %v589, %v846
    %v848 = vpop.f32.mrf.mxu0
    %849 = vmatprep.mubr.f32.mxu0 0.0
    %850 = vmatmul.mubr.f32.gmra.mxu0 %v156
    %v851 = vpop.f32.mrf.mxu0
    %v852 = vadd.f32 %v589, %v851
    %v853 = vpop.f32.mrf.mxu0
    %854 = vdwg.mxu0
    %v855 = vmul.f32 %v660, 1.442695
    %v856 = vpow.pop %v855
    %v857 = vmul.f32 %v662, 1.442695
    %v858 = vpow.pop %v857
    %v859 = vmul.f32 %v797, 1.442695
    %v860 = vpow.pop %v859
    %v861 = vmul.f32 %v666, 1.442695
    %v862 = vpow.pop %v861
    %v863 = vmul.f32 %v668, 1.442695
    %v864 = vpow.pop %v863
    %v865 = vmul.f32 %v802, 1.442695
    %v866 = vpow.pop %v865
    %v867 = vmul.f32 %v672, 1.442695
    %v868 = vpow.pop %v867
    %v869 = vmul.f32 %v674, 1.442695
    %v870 = vpow.pop %v869
    %v871 = vmul.f32 %v807, 1.442695
    %v872 = vpow.pop %v871
    %v873 = vmul.f32 %v678, 1.442695
    %v874 = vpow.pop %v873
    %v875 = vmul.f32 %v680, 1.442695
    %v876 = vpow.pop %v875
    %v877 = vmul.f32 %v812, 1.442695
    %v878 = vpow.pop %v877
    %v879 = vmul.f32 %v684, 1.442695
    %v880 = vpow.pop %v879
    %v881 = vmul.f32 %v686, 1.442695
    %v882 = vpow.pop %v881
    %v883 = vmul.f32 %v817, 1.442695
    %v884 = vpow.pop %v883
    %v885 = vmul.f32 %v690, 1.442695
    %v886 = vpow.pop %v885
    %v887 = vmul.f32 %v692, 1.442695
    %v888 = vpow.pop %v887
    %v889 = vmul.f32 %v822, 1.442695
    %v890 = vpow.pop %v889
    %v891 = vmul.f32 %v696, 1.442695
    %v892 = vpow.pop %v891
    %v893 = vmul.f32 %v698, 1.442695
    %v894 = vpow.pop %v893
    %v895 = vmul.f32 %v827, 1.442695
    %v896 = vpow.pop %v895
    %v897 = vmul.f32 %v702, 1.442695
    %v898 = vpow.pop %v897
    %v899 = vmul.f32 %v704, 1.442695
    %v900 = vpow.pop %v899
    %v901 = vmul.f32 %v832, 1.442695
    %v902 = vpow.pop %v901
    %v903 = vmul.f32 %v708, 1.442695
    %v904 = vpow.pop %v903
    %v905 = vmul.f32 %v710, 1.442695
    %v906 = vpow.pop %v905
    %v907 = vmul.f32 %v837, 1.442695
    %v908 = vpow.pop %v907
    %v909 = vmul.f32 %v714, 1.442695
    %v910 = vpow.pop %v909
    %v911 = vmul.f32 %v716, 1.442695
    %v912 = vpow.pop %v911
    %v913 = vmul.f32 %v842, 1.442695
    %v914 = vpow.pop %v913
    %v915 = vmul.f32 %v720, 1.442695
    %v916 = vpow.pop %v915
    %v917 = vmul.f32 %v722, 1.442695
    %v918 = vpow.pop %v917
    %v919 = vmul.f32 %v847, 1.442695
    %v920 = vpow.pop %v919
    %v921 = vmul.f32 %v726, 1.442695
    %v922 = vpow.pop %v921
    %v923 = vmul.f32 %v728, 1.442695
    %v924 = vpow.pop %v923
    %v925 = vmul.f32 %v852, 1.442695
    %v926 = vpow.pop %v925
    %v927 = vadd.f32 %v856, 1e-06
    %v928 = vadd.f32 %v858, 1e-06
    %v929 = vadd.f32 %v860, 1e-06
    %v930 = vadd.f32 %v862, 1e-06
    %v931 = vadd.f32 %v864, 1e-06
    %v932 = vadd.f32 %v866, 1e-06
    %v933 = vadd.f32 %v868, 1e-06
    %v934 = vadd.f32 %v870, 1e-06
    %v935 = vadd.f32 %v872, 1e-06
    %v936 = vadd.f32 %v874, 1e-06
    %v937 = vadd.f32 %v876, 1e-06
    %v938 = vadd.f32 %v878, 1e-06
    %v939 = vadd.f32 %v880, 1e-06
    %v940 = vadd.f32 %v882, 1e-06
    %v941 = vadd.f32 %v884, 1e-06
    %v942 = vadd.f32 %v886, 1e-06
    %v943 = vadd.f32 %v888, 1e-06
    %v944 = vadd.f32 %v890, 1e-06
    %v945 = vadd.f32 %v892, 1e-06
    %v946 = vadd.f32 %v894, 1e-06
    %v947 = vadd.f32 %v896, 1e-06
    %v948 = vadd.f32 %v898, 1e-06
    %v949 = vadd.f32 %v900, 1e-06
    %v950 = vadd.f32 %v902, 1e-06
    %v951 = vadd.f32 %v904, 1e-06
    %v952 = vadd.f32 %v906, 1e-06
    %v953 = vadd.f32 %v908, 1e-06
    %v954 = vadd.f32 %v910, 1e-06
    %v955 = vadd.f32 %v912, 1e-06
    %v956 = vadd.f32 %v914, 1e-06
    %v957 = vadd.f32 %v916, 1e-06
    %v958 = vadd.f32 %v918, 1e-06
    %v959 = vadd.f32 %v920, 1e-06
    %v960 = vadd.f32 %v922, 1e-06
    %v961 = vadd.f32 %v924, 1e-06
    %v962 = vadd.f32 %v926, 1e-06
    %963 = vst [vmem:[#allocation9] sm:$0xff] %v927
    %964 = vst [vmem:[#allocation9 + $0x8] sm:$0xff] %v928
    %965 = vst [vmem:[#allocation9 + $0x10] sm:$0xff] %v929
    %966 = vst [vmem:[#allocation9 + $0x18] sm:$0xff] %v930
    %967 = vst [vmem:[#allocation9 + $0x20] sm:$0xff] %v931
    %968 = vst [vmem:[#allocation9 + $0x28] sm:$0xff] %v932
    %969 = vst [vmem:[#allocation9 + $0x30] sm:$0xff] %v933
    %970 = vst [vmem:[#allocation9 + $0x38] sm:$0xff] %v934
    %971 = vst [vmem:[#allocation9 + $0x40] sm:$0xff] %v935
    %972 = vst [vmem:[#allocation9 + $0x48] sm:$0xff] %v936
    %973 = vst [vmem:[#allocation9 + $0x50] sm:$0xff] %v937
    %974 = vst [vmem:[#allocation9 + $0x58] sm:$0xff] %v938
    %975 = vst [vmem:[#allocation9 + $0x60] sm:$0xff] %v939
    %976 = vst [vmem:[#allocation9 + $0x68] sm:$0xff] %v940
    %977 = vst [vmem:[#allocation9 + $0x70] sm:$0xff] %v941
    %978 = vst [vmem:[#allocation9 + $0x78] sm:$0xff] %v942
    %979 = vst [vmem:[#allocation9 + $0x80] sm:$0xff] %v943
    %980 = vst [vmem:[#allocation9 + $0x88] sm:$0xff] %v944
    %981 = vst [vmem:[#allocation9 + $0x90] sm:$0xff] %v945
    %982 = vst [vmem:[#allocation9 + $0x98] sm:$0xff] %v946
    %983 = vst [vmem:[#allocation9 + $0xa0] sm:$0xff] %v947
    %984 = vst [vmem:[#allocation9 + $0xa8] sm:$0xff] %v948
    %985 = vst [vmem:[#allocation9 + $0xb0] sm:$0xff] %v949
    %986 = vst [vmem:[#allocation9 + $0xb8] sm:$0xff] %v950
    %987 = vst [vmem:[#allocation9 + $0xc0] sm:$0xff] %v951
    %988 = vst [vmem:[#allocation9 + $0xc8] sm:$0xff] %v952
    %989 = vst [vmem:[#allocation9 + $0xd0] sm:$0xff] %v953
    %990 = vst [vmem:[#allocation9 + $0xd8] sm:$0xff] %v954
    %991 = vst [vmem:[#allocation9 + $0xe0] sm:$0xff] %v955
    %992 = vst [vmem:[#allocation9 + $0xe8] sm:$0xff] %v956
    %993 = vst [vmem:[#allocation9 + $0xf0] sm:$0xff] %v957
    %994 = vst [vmem:[#allocation9 + $0xf8] sm:$0xff] %v958
    %995 = vst [vmem:[#allocation9 + $0x100] sm:$0xff] %v959
    %996 = vst [vmem:[#allocation9 + $0x108] sm:$0xff] %v960
    %997 = vst [vmem:[#allocation9 + $0x110] sm:$0xff] %v961
    %998 = vst [vmem:[#allocation9 + $0x118] sm:$0xff] %v962
    %v999 = vld [vmem:[#allocation5] sm:$0xff]
    %v1000 = vld [vmem:[#allocation5 + $0x8] sm:$0xff]
    %v1001 = vld [vmem:[#allocation5 + $0x10] sm:$0xff]
    %v1002 = vld [vmem:[#allocation5 + $0x18] sm:$0xff]
    %v1003 = vld [vmem:[#allocation5 + $0x20] sm:$0xff]
    %v1004 = vld [vmem:[#allocation5 + $0x28] sm:$0xff]
    %v1005 = vld [vmem:[#allocation5 + $0x30] sm:$0xff]
    %v1006 = vld [vmem:[#allocation5 + $0x38] sm:$0xff]
    %v1007 = vld [vmem:[#allocation5 + $0x40] sm:$0xff]
    %v1008 = vld [vmem:[#allocation5 + $0x48] sm:$0xff]
    %v1009 = vld [vmem:[#allocation5 + $0x50] sm:$0xff]
    %v1010 = vld [vmem:[#allocation5 + $0x58] sm:$0xff]
    %v1011 = vld [vmem:[%s7] sm:$0x7]
    %v1013 = vlaneseq
    %v1014 = vshrl.u32 %v1013, 7
    %v1015 = vsub.s32 0, %v1014
    %v1016 = vrot.slane %v1011, %v1015
    %v1017 = vlaneseq
    %v1018 = vshrl.u32 %v1017, 7
    %v1019 = vsub.s32 1, %v1018
    %v1020 = vrot.slane %v1011, %v1019
    %v1021 = vlaneseq
    %v1022 = vshrl.u32 %v1021, 7
    %v1023 = vsub.s32 2, %v1022
    %v1024 = vrot.slane %v1011, %v1023
    %1028 = vmatprep.subr.mxu0 0.0
    %1029 = vmatpush1.msra.mxu0 0.0
    %1030 = vmatprep.subr.mxu0 0.0
    %1031 = vmatpush1.msra.mxu0 0.0
    %1032 = vmatprep.subr.mxu0 0.0
    %1033 = vmatpush1.msra.mxu0 0.0
    %1034 = vmatprep.subr.mxu0 0.0
    %1035 = vmatpush1.msra.mxu0 0.0
    %1036 = vmatprep.subr.mxu0 0.0
    %1037 = vmatpush1.msra.mxu0 0.0
    %1038 = vmatprep.subr.mxu0 0.0
    %1039 = vmatpush1.msra.mxu0 0.0
    %1040 = vmatprep.subr.mxu0 0.0
    %1041 = vmatpush1.msra.mxu0 0.0
    %1042 = vmatprep.subr.mxu0 0.0
    %1043 = vmatpush1.msra.mxu0 0.0
    %1044 = vmatprep.subr.mxu0 0.0
    %1045 = vmatpush1.msra.mxu0 0.0
    %1046 = vmatprep.subr.mxu0 0.0
    %1047 = vmatpush1.msra.mxu0 0.0
    %1048 = vmatprep.subr.mxu0 0.0
    %1049 = vmatpush1.msra.mxu0 0.0
    %1050 = vmatprep.subr.mxu0 0.0
    %1051 = vmatpush1.msra.mxu0 0.0
    %1052 = vmatprep.subr.mxu0 %v1009
    %1053 = vmatpush1.msra.mxu0 %v1008
    %1054 = vmatprep.subr.mxu0 %v1006
    %1055 = vmatpush1.msra.mxu0 %v1005
    %1056 = vmatprep.subr.mxu0 %v1003
    %1057 = vmatpush1.msra.mxu0 %v1002
    %1058 = vmatprep.subr.mxu0 %v1000
    %1059 = vmatpush1.msra.mxu0 %v999
    %1060 = vmatprep.subr.mxu0 0.0
    %1061 = vmatpush2.msra.mxu0 0.0
    %1062 = vmatprep.subr.mxu0 0.0
    %1063 = vmatpush2.msra.mxu0 0.0
    %1064 = vmatprep.subr.mxu0 0.0
    %1065 = vmatpush2.msra.mxu0 0.0
    %1066 = vmatprep.subr.mxu0 0.0
    %1067 = vmatpush2.msra.mxu0 0.0
    %1068 = vmatprep.subr.mxu0 0.0
    %1069 = vmatpush2.msra.mxu0 0.0
    %1070 = vmatprep.subr.mxu0 0.0
    %1071 = vmatpush2.msra.mxu0 0.0
    %1072 = vmatprep.subr.mxu0 0.0
    %1073 = vmatpush2.msra.mxu0 0.0
    %1074 = vmatprep.subr.mxu0 0.0
    %1075 = vmatpush2.msra.mxu0 0.0
    %1076 = vmatprep.subr.mxu0 0.0
    %1077 = vmatpush2.msra.mxu0 0.0
    %1078 = vmatprep.subr.mxu0 0.0
    %1079 = vmatpush2.msra.mxu0 0.0
    %1080 = vmatprep.subr.mxu0 0.0
    %1081 = vmatpush2.msra.mxu0 0.0
    %1082 = vmatprep.subr.mxu0 0.0
    %1083 = vmatpush2.msra.mxu0 0.0
    %1084 = vmatprep.subr.mxu0 0.0
    %1085 = vmatpush2.msra.mxu0 0.0
    %1086 = vmatprep.subr.mxu0 0.0
    %1087 = vmatpush2.msra.mxu0 0.0
    %1088 = vmatprep.subr.mxu0 0.0
    %1089 = vmatpush2.msra.mxu0 0.0
    %1090 = vmatprep.subr.mxu0 0.0
    %1091 = vmatpush2.msra.mxu0 0.0
    %1092 = vmatprep.mubr.f32.mxu0 0.0
    %1093 = vmatmul.mubr.f32.gmra.mxu0 %v123
    %v1094 = vpop.f32.mrf.mxu0
    %v1095 = vadd.f32 %v1016, %v1094
    %v1096 = vpop.f32.mrf.mxu0
    %v1097 = vadd.f32 %v1020, %v1096
    %1098 = vmatprep.mubr.f32.mxu0 0.0
    %1099 = vmatmul.mubr.f32.gmra.mxu0 %v126
    %v1100 = vpop.f32.mrf.mxu0
    %v1101 = vadd.f32 %v1016, %v1100
    %v1102 = vpop.f32.mrf.mxu0
    %v1103 = vadd.f32 %v1020, %v1102
    %1104 = vmatprep.mubr.f32.mxu0 0.0
    %1105 = vmatmul.mubr.f32.gmra.mxu0 %v129
    %v1106 = vpop.f32.mrf.mxu0
    %v1107 = vadd.f32 %v1016, %v1106
    %v1108 = vpop.f32.mrf.mxu0
    %v1109 = vadd.f32 %v1020, %v1108
    %1110 = vmatprep.mubr.f32.mxu0 0.0
    %1111 = vmatmul.mubr.f32.gmra.mxu0 %v132
    %v1112 = vpop.f32.mrf.mxu0
    %v1113 = vadd.f32 %v1016, %v1112
    %v1114 = vpop.f32.mrf.mxu0
    %v1115 = vadd.f32 %v1020, %v1114
    %1116 = vmatprep.mubr.f32.mxu0 0.0
    %1117 = vmatmul.mubr.f32.gmra.mxu0 %v135
    %v1118 = vpop.f32.mrf.mxu0
    %v1119 = vadd.f32 %v1016, %v1118
    %v1120 = vpop.f32.mrf.mxu0
    %v1121 = vadd.f32 %v1020, %v1120
    %1122 = vmatprep.mubr.f32.mxu0 0.0
    %1123 = vmatmul.mubr.f32.gmra.mxu0 %v138
    %v1124 = vpop.f32.mrf.mxu0
    %v1125 = vadd.f32 %v1016, %v1124
    %v1126 = vpop.f32.mrf.mxu0
    %v1127 = vadd.f32 %v1020, %v1126
    %1128 = vmatprep.mubr.f32.mxu0 0.0
    %1129 = vmatmul.mubr.f32.gmra.mxu0 %v141
    %v1130 = vpop.f32.mrf.mxu0
    %v1131 = vadd.f32 %v1016, %v1130
    %v1132 = vpop.f32.mrf.mxu0
    %v1133 = vadd.f32 %v1020, %v1132
    %1134 = vmatprep.mubr.f32.mxu0 0.0
    %1135 = vmatmul.mubr.f32.gmra.mxu0 %v144
    %v1136 = vpop.f32.mrf.mxu0
    %v1137 = vadd.f32 %v1016, %v1136
    %v1138 = vpop.f32.mrf.mxu0
    %v1139 = vadd.f32 %v1020, %v1138
    %1140 = vmatprep.mubr.f32.mxu0 0.0
    %1141 = vmatmul.mubr.f32.gmra.mxu0 %v147
    %v1142 = vpop.f32.mrf.mxu0
    %v1143 = vadd.f32 %v1016, %v1142
    %v1144 = vpop.f32.mrf.mxu0
    %v1145 = vadd.f32 %v1020, %v1144
    %1146 = vmatprep.mubr.f32.mxu0 0.0
    %1147 = vmatmul.mubr.f32.gmra.mxu0 %v150
    %v1148 = vpop.f32.mrf.mxu0
    %v1149 = vadd.f32 %v1016, %v1148
    %v1150 = vpop.f32.mrf.mxu0
    %v1151 = vadd.f32 %v1020, %v1150
    %1152 = vmatprep.mubr.f32.mxu0 0.0
    %1153 = vmatmul.mubr.f32.gmra.mxu0 %v153
    %v1154 = vpop.f32.mrf.mxu0
    %v1155 = vadd.f32 %v1016, %v1154
    %v1156 = vpop.f32.mrf.mxu0
    %v1157 = vadd.f32 %v1020, %v1156
    %1158 = vmatprep.mubr.f32.mxu0 0.0
    %1159 = vmatmul.mubr.f32.gmra.mxu0 %v156
    %v1160 = vpop.f32.mrf.mxu0
    %v1161 = vadd.f32 %v1016, %v1160
    %v1162 = vpop.f32.mrf.mxu0
    %v1163 = vadd.f32 %v1020, %v1162
    %1164 = vdwg.mxu0
    %1165 = vmatprep.subr.mxu0 0.0
    %1166 = vmatpush1.msra.mxu0 0.0
    %1167 = vmatprep.subr.mxu0 0.0
    %1168 = vmatpush1.msra.mxu0 0.0
    %1169 = vmatprep.subr.mxu0 0.0
    %1170 = vmatpush1.msra.mxu0 0.0
    %1171 = vmatprep.subr.mxu0 0.0
    %1172 = vmatpush1.msra.mxu0 0.0
    %1173 = vmatprep.subr.mxu0 0.0
    %1174 = vmatpush1.msra.mxu0 0.0
    %1175 = vmatprep.subr.mxu0 0.0
    %1176 = vmatpush1.msra.mxu0 0.0
    %1177 = vmatprep.subr.mxu0 0.0
    %1178 = vmatpush1.msra.mxu0 0.0
    %1179 = vmatprep.subr.mxu0 0.0
    %1180 = vmatpush1.msra.mxu0 0.0
    %1181 = vmatprep.subr.mxu0 0.0
    %1182 = vmatpush1.msra.mxu0 0.0
    %1183 = vmatprep.subr.mxu0 0.0
    %1184 = vmatpush1.msra.mxu0 0.0
    %1185 = vmatprep.subr.mxu0 0.0
    %1186 = vmatpush1.msra.mxu0 0.0
    %1187 = vmatprep.subr.mxu0 0.0
    %1188 = vmatpush1.msra.mxu0 0.0
    %1189 = vmatprep.subr.mxu0 0.0
    %1190 = vmatpush1.msra.mxu0 %v1010
    %1191 = vmatprep.subr.mxu0 0.0
    %1192 = vmatpush1.msra.mxu0 %v1007
    %1193 = vmatprep.subr.mxu0 0.0
    %1194 = vmatpush1.msra.mxu0 %v1004
    %1195 = vmatprep.subr.mxu0 0.0
    %1196 = vmatpush1.msra.mxu0 %v1001
    %1197 = vmatprep.subr.mxu0 0.0
    %1198 = vmatpush2.msra.mxu0 0.0
    %1199 = vmatprep.subr.mxu0 0.0
    %1200 = vmatpush2.msra.mxu0 0.0
    %1201 = vmatprep.subr.mxu0 0.0
    %1202 = vmatpush2.msra.mxu0 0.0
    %1203 = vmatprep.subr.mxu0 0.0
    %1204 = vmatpush2.msra.mxu0 0.0
    %1205 = vmatprep.subr.mxu0 0.0
    %1206 = vmatpush2.msra.mxu0 0.0
    %1207 = vmatprep.subr.mxu0 0.0
    %1208 = vmatpush2.msra.mxu0 0.0
    %1209 = vmatprep.subr.mxu0 0.0
    %1210 = vmatpush2.msra.mxu0 0.0
    %1211 = vmatprep.subr.mxu0 0.0
    %1212 = vmatpush2.msra.mxu0 0.0
    %1213 = vmatprep.subr.mxu0 0.0
    %1214 = vmatpush2.msra.mxu0 0.0
    %1215 = vmatprep.subr.mxu0 0.0
    %1216 = vmatpush2.msra.mxu0 0.0
    %1217 = vmatprep.subr.mxu0 0.0
    %1218 = vmatpush2.msra.mxu0 0.0
    %1219 = vmatprep.subr.mxu0 0.0
    %1220 = vmatpush2.msra.mxu0 0.0
    %1221 = vmatprep.subr.mxu0 0.0
    %1222 = vmatpush2.msra.mxu0 0.0
    %1223 = vmatprep.subr.mxu0 0.0
    %1224 = vmatpush2.msra.mxu0 0.0
    %1225 = vmatprep.subr.mxu0 0.0
    %1226 = vmatpush2.msra.mxu0 0.0
    %1227 = vmatprep.subr.mxu0 0.0
    %1228 = vmatpush2.msra.mxu0 0.0
    %1229 = vmatprep.mubr.f32.mxu0 0.0
    %1230 = vmatmul.mubr.f32.gmra.mxu0 %v123
    %v1231 = vpop.f32.mrf.mxu0
    %v1232 = vadd.f32 %v1024, %v1231
    %v1233 = vpop.f32.mrf.mxu0
    %1234 = vmatprep.mubr.f32.mxu0 0.0
    %1235 = vmatmul.mubr.f32.gmra.mxu0 %v126
    %v1236 = vpop.f32.mrf.mxu0
    %v1237 = vadd.f32 %v1024, %v1236
    %v1238 = vpop.f32.mrf.mxu0
    %1239 = vmatprep.mubr.f32.mxu0 0.0
    %1240 = vmatmul.mubr.f32.gmra.mxu0 %v129
    %v1241 = vpop.f32.mrf.mxu0
    %v1242 = vadd.f32 %v1024, %v1241
    %v1243 = vpop.f32.mrf.mxu0
    %1244 = vmatprep.mubr.f32.mxu0 0.0
    %1245 = vmatmul.mubr.f32.gmra.mxu0 %v132
    %v1246 = vpop.f32.mrf.mxu0
    %v1247 = vadd.f32 %v1024, %v1246
    %v1248 = vpop.f32.mrf.mxu0
    %1249 = vmatprep.mubr.f32.mxu0 0.0
    %1250 = vmatmul.mubr.f32.gmra.mxu0 %v135
    %v1251 = vpop.f32.mrf.mxu0
    %v1252 = vadd.f32 %v1024, %v1251
    %v1253 = vpop.f32.mrf.mxu0
    %1254 = vmatprep.mubr.f32.mxu0 0.0
    %1255 = vmatmul.mubr.f32.gmra.mxu0 %v138
    %v1256 = vpop.f32.mrf.mxu0
    %v1257 = vadd.f32 %v1024, %v1256
    %v1258 = vpop.f32.mrf.mxu0
    %1259 = vmatprep.mubr.f32.mxu0 0.0
    %1260 = vmatmul.mubr.f32.gmra.mxu0 %v141
    %v1261 = vpop.f32.mrf.mxu0
    %v1262 = vadd.f32 %v1024, %v1261
    %v1263 = vpop.f32.mrf.mxu0
    %1264 = vmatprep.mubr.f32.mxu0 0.0
    %1265 = vmatmul.mubr.f32.gmra.mxu0 %v144
    %v1266 = vpop.f32.mrf.mxu0
    %v1267 = vadd.f32 %v1024, %v1266
    %v1268 = vpop.f32.mrf.mxu0
    %1269 = vmatprep.mubr.f32.mxu0 0.0
    %1270 = vmatmul.mubr.f32.gmra.mxu0 %v147
    %v1271 = vpop.f32.mrf.mxu0
    %v1272 = vadd.f32 %v1024, %v1271
    %v1273 = vpop.f32.mrf.mxu0
    %1274 = vmatprep.mubr.f32.mxu0 0.0
    %1275 = vmatmul.mubr.f32.gmra.mxu0 %v150
    %v1276 = vpop.f32.mrf.mxu0
    %v1277 = vadd.f32 %v1024, %v1276
    %v1278 = vpop.f32.mrf.mxu0
    %1279 = vmatprep.mubr.f32.mxu0 0.0
    %1280 = vmatmul.mubr.f32.gmra.mxu0 %v153
    %v1281 = vpop.f32.mrf.mxu0
    %v1282 = vadd.f32 %v1024, %v1281
    %v1283 = vpop.f32.mrf.mxu0
    %1284 = vmatprep.mubr.f32.mxu0 0.0
    %1285 = vmatmul.mubr.f32.gmra.mxu0 %v156
    %v1286 = vpop.f32.mrf.mxu0
    %v1287 = vadd.f32 %v1024, %v1286
    %v1288 = vpop.f32.mrf.mxu0
    %1289 = vdwg.mxu0
    %v1290 = vmul.f32 %v1095, 1.442695
    %v1291 = vpow.pop %v1290
    %v1292 = vmul.f32 %v1097, 1.442695
    %v1293 = vpow.pop %v1292
    %v1294 = vmul.f32 %v1232, 1.442695
    %v1295 = vpow.pop %v1294
    %v1296 = vmul.f32 %v1101, 1.442695
    %v1297 = vpow.pop %v1296
    %v1298 = vmul.f32 %v1103, 1.442695
    %v1299 = vpow.pop %v1298
    %v1300 = vmul.f32 %v1237, 1.442695
    %v1301 = vpow.pop %v1300
    %v1302 = vmul.f32 %v1107, 1.442695
    %v1303 = vpow.pop %v1302
    %v1304 = vmul.f32 %v1109, 1.442695
    %v1305 = vpow.pop %v1304
    %v1306 = vmul.f32 %v1242, 1.442695
    %v1307 = vpow.pop %v1306
    %v1308 = vmul.f32 %v1113, 1.442695
    %v1309 = vpow.pop %v1308
    %v1310 = vmul.f32 %v1115, 1.442695
    %v1311 = vpow.pop %v1310
    %v1312 = vmul.f32 %v1247, 1.442695
    %v1313 = vpow.pop %v1312
    %v1314 = vmul.f32 %v1119, 1.442695
    %v1315 = vpow.pop %v1314
    %v1316 = vmul.f32 %v1121, 1.442695
    %v1317 = vpow.pop %v1316
    %v1318 = vmul.f32 %v1252, 1.442695
    %v1319 = vpow.pop %v1318
    %v1320 = vmul.f32 %v1125, 1.442695
    %v1321 = vpow.pop %v1320
    %v1322 = vmul.f32 %v1127, 1.442695
    %v1323 = vpow.pop %v1322
    %v1324 = vmul.f32 %v1257, 1.442695
    %v1325 = vpow.pop %v1324
    %v1326 = vmul.f32 %v1131, 1.442695
    %v1327 = vpow.pop %v1326
    %v1328 = vmul.f32 %v1133, 1.442695
    %v1329 = vpow.pop %v1328
    %v1330 = vmul.f32 %v1262, 1.442695
    %v1331 = vpow.pop %v1330
    %v1332 = vmul.f32 %v1137, 1.442695
    %v1333 = vpow.pop %v1332
    %v1334 = vmul.f32 %v1139, 1.442695
    %v1335 = vpow.pop %v1334
    %v1336 = vmul.f32 %v1267, 1.442695
    %v1337 = vpow.pop %v1336
    %v1338 = vmul.f32 %v1143, 1.442695
    %v1339 = vpow.pop %v1338
    %v1340 = vmul.f32 %v1145, 1.442695
    %v1341 = vpow.pop %v1340
    %v1342 = vmul.f32 %v1272, 1.442695
    %v1343 = vpow.pop %v1342
    %v1344 = vmul.f32 %v1149, 1.442695
    %v1345 = vpow.pop %v1344
    %v1346 = vmul.f32 %v1151, 1.442695
    %v1347 = vpow.pop %v1346
    %v1348 = vmul.f32 %v1277, 1.442695
    %v1349 = vpow.pop %v1348
    %v1350 = vmul.f32 %v1155, 1.442695
    %v1351 = vpow.pop %v1350
    %v1352 = vmul.f32 %v1157, 1.442695
    %v1353 = vpow.pop %v1352
    %v1354 = vmul.f32 %v1282, 1.442695
    %v1355 = vpow.pop %v1354
    %v1356 = vmul.f32 %v1161, 1.442695
    %v1357 = vpow.pop %v1356
    %v1358 = vmul.f32 %v1163, 1.442695
    %v1359 = vpow.pop %v1358
    %v1360 = vmul.f32 %v1287, 1.442695
    %v1361 = vpow.pop %v1360
    %v1362 = vadd.f32 %v1291, 1e-06
    %v1363 = vadd.f32 %v1293, 1e-06
    %v1364 = vadd.f32 %v1295, 1e-06
    %v1365 = vadd.f32 %v1297, 1e-06
    %v1366 = vadd.f32 %v1299, 1e-06
    %v1367 = vadd.f32 %v1301, 1e-06
    %v1368 = vadd.f32 %v1303, 1e-06
    %v1369 = vadd.f32 %v1305, 1e-06
    %v1370 = vadd.f32 %v1307, 1e-06
    %v1371 = vadd.f32 %v1309, 1e-06
    %v1372 = vadd.f32 %v1311, 1e-06
    %v1373 = vadd.f32 %v1313, 1e-06
    %v1374 = vadd.f32 %v1315, 1e-06
    %v1375 = vadd.f32 %v1317, 1e-06
    %v1376 = vadd.f32 %v1319, 1e-06
    %v1377 = vadd.f32 %v1321, 1e-06
    %v1378 = vadd.f32 %v1323, 1e-06
    %v1379 = vadd.f32 %v1325, 1e-06
    %v1380 = vadd.f32 %v1327, 1e-06
    %v1381 = vadd.f32 %v1329, 1e-06
    %v1382 = vadd.f32 %v1331, 1e-06
    %v1383 = vadd.f32 %v1333, 1e-06
    %v1384 = vadd.f32 %v1335, 1e-06
    %v1385 = vadd.f32 %v1337, 1e-06
    %v1386 = vadd.f32 %v1339, 1e-06
    %v1387 = vadd.f32 %v1341, 1e-06
    %v1388 = vadd.f32 %v1343, 1e-06
    %v1389 = vadd.f32 %v1345, 1e-06
    %v1390 = vadd.f32 %v1347, 1e-06
    %v1391 = vadd.f32 %v1349, 1e-06
    %v1392 = vadd.f32 %v1351, 1e-06
    %v1393 = vadd.f32 %v1353, 1e-06
    %v1394 = vadd.f32 %v1355, 1e-06
    %v1395 = vadd.f32 %v1357, 1e-06
    %v1396 = vadd.f32 %v1359, 1e-06
    %v1397 = vadd.f32 %v1361, 1e-06
    %1398 = vst [vmem:[#allocation11] sm:$0xff] %v1362
    %1399 = vst [vmem:[#allocation11 + $0x8] sm:$0xff] %v1363
    %1400 = vst [vmem:[#allocation11 + $0x10] sm:$0xff] %v1364
    %1401 = vst [vmem:[#allocation11 + $0x18] sm:$0xff] %v1365
    %1402 = vst [vmem:[#allocation11 + $0x20] sm:$0xff] %v1366
    %1403 = vst [vmem:[#allocation11 + $0x28] sm:$0xff] %v1367
    %1404 = vst [vmem:[#allocation11 + $0x30] sm:$0xff] %v1368
    %1405 = vst [vmem:[#allocation11 + $0x38] sm:$0xff] %v1369
    %1406 = vst [vmem:[#allocation11 + $0x40] sm:$0xff] %v1370
    %1407 = vst [vmem:[#allocation11 + $0x48] sm:$0xff] %v1371
    %1408 = vst [vmem:[#allocation11 + $0x50] sm:$0xff] %v1372
    %1409 = vst [vmem:[#allocation11 + $0x58] sm:$0xff] %v1373
    %1410 = vst [vmem:[#allocation11 + $0x60] sm:$0xff] %v1374
    %1411 = vst [vmem:[#allocation11 + $0x68] sm:$0xff] %v1375
    %1412 = vst [vmem:[#allocation11 + $0x70] sm:$0xff] %v1376
    %1413 = vst [vmem:[#allocation11 + $0x78] sm:$0xff] %v1377
    %1414 = vst [vmem:[#allocation11 + $0x80] sm:$0xff] %v1378
    %1415 = vst [vmem:[#allocation11 + $0x88] sm:$0xff] %v1379
    %1416 = vst [vmem:[#allocation11 + $0x90] sm:$0xff] %v1380
    %1417 = vst [vmem:[#allocation11 + $0x98] sm:$0xff] %v1381
    %1418 = vst [vmem:[#allocation11 + $0xa0] sm:$0xff] %v1382
    %1419 = vst [vmem:[#allocation11 + $0xa8] sm:$0xff] %v1383
    %1420 = vst [vmem:[#allocation11 + $0xb0] sm:$0xff] %v1384
    %1421 = vst [vmem:[#allocation11 + $0xb8] sm:$0xff] %v1385
    %1422 = vst [vmem:[#allocation11 + $0xc0] sm:$0xff] %v1386
    %1423 = vst [vmem:[#allocation11 + $0xc8] sm:$0xff] %v1387
    %1424 = vst [vmem:[#allocation11 + $0xd0] sm:$0xff] %v1388
    %1425 = vst [vmem:[#allocation11 + $0xd8] sm:$0xff] %v1389
    %1426 = vst [vmem:[#allocation11 + $0xe0] sm:$0xff] %v1390
    %1427 = vst [vmem:[#allocation11 + $0xe8] sm:$0xff] %v1391
    %1428 = vst [vmem:[#allocation11 + $0xf0] sm:$0xff] %v1392
    %1429 = vst [vmem:[#allocation11 + $0xf8] sm:$0xff] %v1393
    %1430 = vst [vmem:[#allocation11 + $0x100] sm:$0xff] %v1394
    %1431 = vst [vmem:[#allocation11 + $0x108] sm:$0xff] %v1395
    %1432 = vst [vmem:[#allocation11 + $0x110] sm:$0xff] %v1396
    %1433 = vst [vmem:[#allocation11 + $0x118] sm:$0xff] %v1397
    %v1434 = vld [vmem:[#allocation7] sm:$0xff]
    %v1435 = vld [vmem:[#allocation7 + $0x8] sm:$0xff]
    %v1436 = vld [vmem:[#allocation7 + $0x10] sm:$0xff]
    %v1437 = vld [vmem:[#allocation7 + $0x18] sm:$0xff]
    %v1438 = vld [vmem:[#allocation7 + $0x20] sm:$0xff]
    %v1439 = vld [vmem:[#allocation7 + $0x28] sm:$0xff]
    %v1440 = vld [vmem:[#allocation7 + $0x30] sm:$0xff]
    %v1441 = vld [vmem:[#allocation7 + $0x38] sm:$0xff]
    %v1442 = vld [vmem:[#allocation7 + $0x40] sm:$0xff]
    %v1443 = vld [vmem:[#allocation7 + $0x48] sm:$0xff]
    %v1444 = vld [vmem:[#allocation7 + $0x50] sm:$0xff]
    %v1445 = vld [vmem:[#allocation7 + $0x58] sm:$0xff]
    %v1446 = vld [vmem:[%s8] sm:$0x7]
    %v1448 = vlaneseq
    %v1449 = vshrl.u32 %v1448, 7
    %v1450 = vsub.s32 0, %v1449
    %v1451 = vrot.slane %v1446, %v1450
    %v1452 = vlaneseq
    %v1453 = vshrl.u32 %v1452, 7
    %v1454 = vsub.s32 1, %v1453
    %v1455 = vrot.slane %v1446, %v1454
    %v1456 = vlaneseq
    %v1457 = vshrl.u32 %v1456, 7
    %v1458 = vsub.s32 2, %v1457
    %v1459 = vrot.slane %v1446, %v1458
    %1463 = vmatprep.subr.mxu0 0.0
    %1464 = vmatpush1.msra.mxu0 0.0
    %1465 = vmatprep.subr.mxu0 0.0
    %1466 = vmatpush1.msra.mxu0 0.0
    %1467 = vmatprep.subr.mxu0 0.0
    %1468 = vmatpush1.msra.mxu0 0.0
    %1469 = vmatprep.subr.mxu0 0.0
    %1470 = vmatpush1.msra.mxu0 0.0
    %1471 = vmatprep.subr.mxu0 0.0
    %1472 = vmatpush1.msra.mxu0 0.0
    %1473 = vmatprep.subr.mxu0 0.0
    %1474 = vmatpush1.msra.mxu0 0.0
    %1475 = vmatprep.subr.mxu0 0.0
    %1476 = vmatpush1.msra.mxu0 0.0
    %1477 = vmatprep.subr.mxu0 0.0
    %1478 = vmatpush1.msra.mxu0 0.0
    %1479 = vmatprep.subr.mxu0 0.0
    %1480 = vmatpush1.msra.mxu0 0.0
    %1481 = vmatprep.subr.mxu0 0.0
    %1482 = vmatpush1.msra.mxu0 0.0
    %1483 = vmatprep.subr.mxu0 0.0
    %1484 = vmatpush1.msra.mxu0 0.0
    %1485 = vmatprep.subr.mxu0 0.0
    %1486 = vmatpush1.msra.mxu0 0.0
    %1487 = vmatprep.subr.mxu0 %v1444
    %1488 = vmatpush1.msra.mxu0 %v1443
    %1489 = vmatprep.subr.mxu0 %v1441
    %1490 = vmatpush1.msra.mxu0 %v1440
    %1491 = vmatprep.subr.mxu0 %v1438
    %1492 = vmatpush1.msra.mxu0 %v1437
    %1493 = vmatprep.subr.mxu0 %v1435
    %1494 = vmatpush1.msra.mxu0 %v1434
    %1495 = vmatprep.subr.mxu0 0.0
    %1496 = vmatpush2.msra.mxu0 0.0
    %1497 = vmatprep.subr.mxu0 0.0
    %1498 = vmatpush2.msra.mxu0 0.0
    %1499 = vmatprep.subr.mxu0 0.0
    %1500 = vmatpush2.msra.mxu0 0.0
    %1501 = vmatprep.subr.mxu0 0.0
    %1502 = vmatpush2.msra.mxu0 0.0
    %1503 = vmatprep.subr.mxu0 0.0
    %1504 = vmatpush2.msra.mxu0 0.0
    %1505 = vmatprep.subr.mxu0 0.0
    %1506 = vmatpush2.msra.mxu0 0.0
    %1507 = vmatprep.subr.mxu0 0.0
    %1508 = vmatpush2.msra.mxu0 0.0
    %1509 = vmatprep.subr.mxu0 0.0
    %1510 = vmatpush2.msra.mxu0 0.0
    %1511 = vmatprep.subr.mxu0 0.0
    %1512 = vmatpush2.msra.mxu0 0.0
    %1513 = vmatprep.subr.mxu0 0.0
    %1514 = vmatpush2.msra.mxu0 0.0
    %1515 = vmatprep.subr.mxu0 0.0
    %1516 = vmatpush2.msra.mxu0 0.0
    %1517 = vmatprep.subr.mxu0 0.0
    %1518 = vmatpush2.msra.mxu0 0.0
    %1519 = vmatprep.subr.mxu0 0.0
    %1520 = vmatpush2.msra.mxu0 0.0
    %1521 = vmatprep.subr.mxu0 0.0
    %1522 = vmatpush2.msra.mxu0 0.0
    %1523 = vmatprep.subr.mxu0 0.0
    %1524 = vmatpush2.msra.mxu0 0.0
    %1525 = vmatprep.subr.mxu0 0.0
    %1526 = vmatpush2.msra.mxu0 0.0
    %1527 = vmatprep.mubr.f32.mxu0 0.0
    %1528 = vmatmul.mubr.f32.gmra.mxu0 %v123
    %v1529 = vpop.f32.mrf.mxu0
    %v1530 = vadd.f32 %v1451, %v1529
    %v1531 = vpop.f32.mrf.mxu0
    %v1532 = vadd.f32 %v1455, %v1531
    %1533 = vmatprep.mubr.f32.mxu0 0.0
    %1534 = vmatmul.mubr.f32.gmra.mxu0 %v126
    %v1535 = vpop.f32.mrf.mxu0
    %v1536 = vadd.f32 %v1451, %v1535
    %v1537 = vpop.f32.mrf.mxu0
    %v1538 = vadd.f32 %v1455, %v1537
    %1539 = vmatprep.mubr.f32.mxu0 0.0
    %1540 = vmatmul.mubr.f32.gmra.mxu0 %v129
    %v1541 = vpop.f32.mrf.mxu0
    %v1542 = vadd.f32 %v1451, %v1541
    %v1543 = vpop.f32.mrf.mxu0
    %v1544 = vadd.f32 %v1455, %v1543
    %1545 = vmatprep.mubr.f32.mxu0 0.0
    %1546 = vmatmul.mubr.f32.gmra.mxu0 %v132
    %v1547 = vpop.f32.mrf.mxu0
    %v1548 = vadd.f32 %v1451, %v1547
    %v1549 = vpop.f32.mrf.mxu0
    %v1550 = vadd.f32 %v1455, %v1549
    %1551 = vmatprep.mubr.f32.mxu0 0.0
    %1552 = vmatmul.mubr.f32.gmra.mxu0 %v135
    %v1553 = vpop.f32.mrf.mxu0
    %v1554 = vadd.f32 %v1451, %v1553
    %v1555 = vpop.f32.mrf.mxu0
    %v1556 = vadd.f32 %v1455, %v1555
    %1557 = vmatprep.mubr.f32.mxu0 0.0
    %1558 = vmatmul.mubr.f32.gmra.mxu0 %v138
    %v1559 = vpop.f32.mrf.mxu0
    %v1560 = vadd.f32 %v1451, %v1559
    %v1561 = vpop.f32.mrf.mxu0
    %v1562 = vadd.f32 %v1455, %v1561
    %1563 = vmatprep.mubr.f32.mxu0 0.0
    %1564 = vmatmul.mubr.f32.gmra.mxu0 %v141
    %v1565 = vpop.f32.mrf.mxu0
    %v1566 = vadd.f32 %v1451, %v1565
    %v1567 = vpop.f32.mrf.mxu0
    %v1568 = vadd.f32 %v1455, %v1567
    %1569 = vmatprep.mubr.f32.mxu0 0.0
    %1570 = vmatmul.mubr.f32.gmra.mxu0 %v144
    %v1571 = vpop.f32.mrf.mxu0
    %v1572 = vadd.f32 %v1451, %v1571
    %v1573 = vpop.f32.mrf.mxu0
    %v1574 = vadd.f32 %v1455, %v1573
    %1575 = vmatprep.mubr.f32.mxu0 0.0
    %1576 = vmatmul.mubr.f32.gmra.mxu0 %v147
    %v1577 = vpop.f32.mrf.mxu0
    %v1578 = vadd.f32 %v1451, %v1577
    %v1579 = vpop.f32.mrf.mxu0
    %v1580 = vadd.f32 %v1455, %v1579
    %1581 = vmatprep.mubr.f32.mxu0 0.0
    %1582 = vmatmul.mubr.f32.gmra.mxu0 %v150
    %v1583 = vpop.f32.mrf.mxu0
    %v1584 = vadd.f32 %v1451, %v1583
    %v1585 = vpop.f32.mrf.mxu0
    %v1586 = vadd.f32 %v1455, %v1585
    %1587 = vmatprep.mubr.f32.mxu0 0.0
    %1588 = vmatmul.mubr.f32.gmra.mxu0 %v153
    %v1589 = vpop.f32.mrf.mxu0
    %v1590 = vadd.f32 %v1451, %v1589
    %v1591 = vpop.f32.mrf.mxu0
    %v1592 = vadd.f32 %v1455, %v1591
    %1593 = vmatprep.mubr.f32.mxu0 0.0
    %1594 = vmatmul.mubr.f32.gmra.mxu0 %v156
    %v1595 = vpop.f32.mrf.mxu0
    %v1596 = vadd.f32 %v1451, %v1595
    %v1597 = vpop.f32.mrf.mxu0
    %v1598 = vadd.f32 %v1455, %v1597
    %1599 = vdwg.mxu0
    %1600 = vmatprep.subr.mxu0 0.0
    %1601 = vmatpush1.msra.mxu0 0.0
    %1602 = vmatprep.subr.mxu0 0.0
    %1603 = vmatpush1.msra.mxu0 0.0
    %1604 = vmatprep.subr.mxu0 0.0
    %1605 = vmatpush1.msra.mxu0 0.0
    %1606 = vmatprep.subr.mxu0 0.0
    %1607 = vmatpush1.msra.mxu0 0.0
    %1608 = vmatprep.subr.mxu0 0.0
    %1609 = vmatpush1.msra.mxu0 0.0
    %1610 = vmatprep.subr.mxu0 0.0
    %1611 = vmatpush1.msra.mxu0 0.0
    %1612 = vmatprep.subr.mxu0 0.0
    %1613 = vmatpush1.msra.mxu0 0.0
    %1614 = vmatprep.subr.mxu0 0.0
    %1615 = vmatpush1.msra.mxu0 0.0
    %1616 = vmatprep.subr.mxu0 0.0
    %1617 = vmatpush1.msra.mxu0 0.0
    %1618 = vmatprep.subr.mxu0 0.0
    %1619 = vmatpush1.msra.mxu0 0.0
    %1620 = vmatprep.subr.mxu0 0.0
    %1621 = vmatpush1.msra.mxu0 0.0
    %1622 = vmatprep.subr.mxu0 0.0
    %1623 = vmatpush1.msra.mxu0 0.0
    %1624 = vmatprep.subr.mxu0 0.0
    %1625 = vmatpush1.msra.mxu0 %v1445
    %1626 = vmatprep.subr.mxu0 0.0
    %1627 = vmatpush1.msra.mxu0 %v1442
    %1628 = vmatprep.subr.mxu0 0.0
    %1629 = vmatpush1.msra.mxu0 %v1439
    %1630 = vmatprep.subr.mxu0 0.0
    %1631 = vmatpush1.msra.mxu0 %v1436
    %1632 = vmatprep.subr.mxu0 0.0
    %1633 = vmatpush2.msra.mxu0 0.0
    %1634 = vmatprep.subr.mxu0 0.0
    %1635 = vmatpush2.msra.mxu0 0.0
    %1636 = vmatprep.subr.mxu0 0.0
    %1637 = vmatpush2.msra.mxu0 0.0
    %1638 = vmatprep.subr.mxu0 0.0
    %1639 = vmatpush2.msra.mxu0 0.0
    %1640 = vmatprep.subr.mxu0 0.0
    %1641 = vmatpush2.msra.mxu0 0.0
    %1642 = vmatprep.subr.mxu0 0.0
    %1643 = vmatpush2.msra.mxu0 0.0
    %1644 = vmatprep.subr.mxu0 0.0
    %1645 = vmatpush2.msra.mxu0 0.0
    %1646 = vmatprep.subr.mxu0 0.0
    %1647 = vmatpush2.msra.mxu0 0.0
    %1648 = vmatprep.subr.mxu0 0.0
    %1649 = vmatpush2.msra.mxu0 0.0
    %1650 = vmatprep.subr.mxu0 0.0
    %1651 = vmatpush2.msra.mxu0 0.0
    %1652 = vmatprep.subr.mxu0 0.0
    %1653 = vmatpush2.msra.mxu0 0.0
    %1654 = vmatprep.subr.mxu0 0.0
    %1655 = vmatpush2.msra.mxu0 0.0
    %1656 = vmatprep.subr.mxu0 0.0
    %1657 = vmatpush2.msra.mxu0 0.0
    %1658 = vmatprep.subr.mxu0 0.0
    %1659 = vmatpush2.msra.mxu0 0.0
    %1660 = vmatprep.subr.mxu0 0.0
    %1661 = vmatpush2.msra.mxu0 0.0
    %1662 = vmatprep.subr.mxu0 0.0
    %1663 = vmatpush2.msra.mxu0 0.0
    %1664 = vmatprep.mubr.f32.mxu0 0.0
    %1665 = vmatmul.mubr.f32.gmra.mxu0 %v123
    %v1666 = vpop.f32.mrf.mxu0
    %v1667 = vadd.f32 %v1459, %v1666
    %v1668 = vpop.f32.mrf.mxu0
    %1669 = vmatprep.mubr.f32.mxu0 0.0
    %1670 = vmatmul.mubr.f32.gmra.mxu0 %v126
    %v1671 = vpop.f32.mrf.mxu0
    %v1672 = vadd.f32 %v1459, %v1671
    %v1673 = vpop.f32.mrf.mxu0
    %1674 = vmatprep.mubr.f32.mxu0 0.0
    %1675 = vmatmul.mubr.f32.gmra.mxu0 %v129
    %v1676 = vpop.f32.mrf.mxu0
    %v1677 = vadd.f32 %v1459, %v1676
    %v1678 = vpop.f32.mrf.mxu0
    %1679 = vmatprep.mubr.f32.mxu0 0.0
    %1680 = vmatmul.mubr.f32.gmra.mxu0 %v132
    %v1681 = vpop.f32.mrf.mxu0
    %v1682 = vadd.f32 %v1459, %v1681
    %v1683 = vpop.f32.mrf.mxu0
    %1684 = vmatprep.mubr.f32.mxu0 0.0
    %1685 = vmatmul.mubr.f32.gmra.mxu0 %v135
    %v1686 = vpop.f32.mrf.mxu0
    %v1687 = vadd.f32 %v1459, %v1686
    %v1688 = vpop.f32.mrf.mxu0
    %1689 = vmatprep.mubr.f32.mxu0 0.0
    %1690 = vmatmul.mubr.f32.gmra.mxu0 %v138
    %v1691 = vpop.f32.mrf.mxu0
    %v1692 = vadd.f32 %v1459, %v1691
    %v1693 = vpop.f32.mrf.mxu0
    %1694 = vmatprep.mubr.f32.mxu0 0.0
    %1695 = vmatmul.mubr.f32.gmra.mxu0 %v141
    %v1696 = vpop.f32.mrf.mxu0
    %v1697 = vadd.f32 %v1459, %v1696
    %v1698 = vpop.f32.mrf.mxu0
    %1699 = vmatprep.mubr.f32.mxu0 0.0
    %1700 = vmatmul.mubr.f32.gmra.mxu0 %v144
    %v1701 = vpop.f32.mrf.mxu0
    %v1702 = vadd.f32 %v1459, %v1701
    %v1703 = vpop.f32.mrf.mxu0
    %1704 = vmatprep.mubr.f32.mxu0 0.0
    %1705 = vmatmul.mubr.f32.gmra.mxu0 %v147
    %v1706 = vpop.f32.mrf.mxu0
    %v1707 = vadd.f32 %v1459, %v1706
    %v1708 = vpop.f32.mrf.mxu0
    %1709 = vmatprep.mubr.f32.mxu0 0.0
    %1710 = vmatmul.mubr.f32.gmra.mxu0 %v150
    %v1711 = vpop.f32.mrf.mxu0
    %v1712 = vadd.f32 %v1459, %v1711
    %v1713 = vpop.f32.mrf.mxu0
    %1714 = vmatprep.mubr.f32.mxu0 0.0
    %1715 = vmatmul.mubr.f32.gmra.mxu0 %v153
    %v1716 = vpop.f32.mrf.mxu0
    %v1717 = vadd.f32 %v1459, %v1716
    %v1718 = vpop.f32.mrf.mxu0
    %1719 = vmatprep.mubr.f32.mxu0 0.0
    %1720 = vmatmul.mubr.f32.gmra.mxu0 %v156
    %v1721 = vpop.f32.mrf.mxu0
    %v1722 = vadd.f32 %v1459, %v1721
    %v1723 = vpop.f32.mrf.mxu0
    %1724 = vdwg.mxu0
    %1725 = vst [vmem:[#allocation12] sm:$0xff] %v1530
    %1726 = vst [vmem:[#allocation12 + $0x8] sm:$0xff] %v1532
    %1727 = vst [vmem:[#allocation12 + $0x10] sm:$0xff] %v1667
    %1728 = vst [vmem:[#allocation12 + $0x18] sm:$0xff] %v1536
    %1729 = vst [vmem:[#allocation12 + $0x20] sm:$0xff] %v1538
    %1730 = vst [vmem:[#allocation12 + $0x28] sm:$0xff] %v1672
    %1731 = vst [vmem:[#allocation12 + $0x30] sm:$0xff] %v1542
    %1732 = vst [vmem:[#allocation12 + $0x38] sm:$0xff] %v1544
    %1733 = vst [vmem:[#allocation12 + $0x40] sm:$0xff] %v1677
    %1734 = vst [vmem:[#allocation12 + $0x48] sm:$0xff] %v1548
    %1735 = vst [vmem:[#allocation12 + $0x50] sm:$0xff] %v1550
    %1736 = vst [vmem:[#allocation12 + $0x58] sm:$0xff] %v1682
    %1737 = vst [vmem:[#allocation12 + $0x60] sm:$0xff] %v1554
    %1738 = vst [vmem:[#allocation12 + $0x68] sm:$0xff] %v1556
    %1739 = vst [vmem:[#allocation12 + $0x70] sm:$0xff] %v1687
    %1740 = vst [vmem:[#allocation12 + $0x78] sm:$0xff] %v1560
    %1741 = vst [vmem:[#allocation12 + $0x80] sm:$0xff] %v1562
    %1742 = vst [vmem:[#allocation12 + $0x88] sm:$0xff] %v1692
    %1743 = vst [vmem:[#allocation12 + $0x90] sm:$0xff] %v1566
    %1744 = vst [vmem:[#allocation12 + $0x98] sm:$0xff] %v1568
    %1745 = vst [vmem:[#allocation12 + $0xa0] sm:$0xff] %v1697
    %1746 = vst [vmem:[#allocation12 + $0xa8] sm:$0xff] %v1572
    %1747 = vst [vmem:[#allocation12 + $0xb0] sm:$0xff] %v1574
    %1748 = vst [vmem:[#allocation12 + $0xb8] sm:$0xff] %v1702
    %1749 = vst [vmem:[#allocation12 + $0xc0] sm:$0xff] %v1578
    %1750 = vst [vmem:[#allocation12 + $0xc8] sm:$0xff] %v1580
    %1751 = vst [vmem:[#allocation12 + $0xd0] sm:$0xff] %v1707
    %1752 = vst [vmem:[#allocation12 + $0xd8] sm:$0xff] %v1584
    %1753 = vst [vmem:[#allocation12 + $0xe0] sm:$0xff] %v1586
    %1754 = vst [vmem:[#allocation12 + $0xe8] sm:$0xff] %v1712
    %1755 = vst [vmem:[#allocation12 + $0xf0] sm:$0xff] %v1590
    %1756 = vst [vmem:[#allocation12 + $0xf8] sm:$0xff] %v1592
    %1757 = vst [vmem:[#allocation12 + $0x100] sm:$0xff] %v1717
    %1758 = vst [vmem:[#allocation12 + $0x108] sm:$0xff] %v1596
    %1759 = vst [vmem:[#allocation12 + $0x110] sm:$0xff] %v1598
    %1760 = vst [vmem:[#allocation12 + $0x118] sm:$0xff] %v1722
    // Predicated region
    $region50: #{tpu_custom_call.1} parent=1 // pred_check
      _
    $region51: #{tpu_custom_call.1} parent=1 // pred_check_branch
      %1762 = sbr.rel (0) target = $region53
    $region52: #{tpu_custom_call.1} parent=1 // pred_region
      %s1764 = ssub.s32 4608, 4608
      %1765 = vsyncadd [#allocation4], %s1764
      %s1766 = sshll.u32 [#allocation8], 4
      %s1767 = int_to_ptr.vmem [resolvable:$true] %s1766
      %1772 = dma.vmem_to_hbm [thread:$0]  %s1767, 4608, %s9, [#allocation4], 384, 384, 24
    $region53: #{tpu_custom_call.1} parent=1 // pred_fallthru
      _
    // Predicated region
    $region54: #{tpu_custom_call.1} parent=1 // pred_check
      _
    $region55: #{tpu_custom_call.1} parent=1 // pred_check_branch
      %1774 = sbr.rel (0) target = $region57
    $region56: #{tpu_custom_call.1} parent=1 // pred_region
      %s1776 = ssub.s32 4608, 4608
      %1777 = vsyncadd [#allocation10], %s1776
      %s1778 = sshll.u32 [#allocation9], 4
      %s1779 = int_to_ptr.vmem [resolvable:$true] %s1778
      %1784 = dma.vmem_to_hbm [thread:$0]  %s1779, 4608, %s10, [#allocation10], 384, 384, 24
    $region57: #{tpu_custom_call.1} parent=1 // pred_fallthru
      _
    // Predicated region
    $region58: #{tpu_custom_call.1} parent=1 // pred_check
      _
    $region59: #{tpu_custom_call.1} parent=1 // pred_check_branch
      %1786 = sbr.rel (0) target = $region61
    $region60: #{tpu_custom_call.1} parent=1 // pred_region
      %s1788 = ssub.s32 4608, 4608
      %1789 = vsyncadd [#allocation10], %s1788
      %s1790 = sshll.u32 [#allocation11], 4
      %s1791 = int_to_ptr.vmem [resolvable:$true] %s1790
      %1796 = dma.vmem_to_hbm [thread:$0]  %s1791, 4608, %s11, [#allocation10], 384, 384, 24
    $region61: #{tpu_custom_call.1} parent=1 // pred_fallthru
      _
    // Predicated region
    $region62: #{tpu_custom_call.1} parent=1 // pred_check
      _
    $region63: #{tpu_custom_call.1} parent=1 // pred_check_branch
      %1798 = sbr.rel (0) target = $region65
    $region64: #{tpu_custom_call.1} parent=1 // pred_region
      %s1800 = ssub.s32 4608, 4608
      %1801 = vsyncadd [#allocation13], %s1800
      %s1802 = sshll.u32 [#allocation12], 4
      %s1803 = int_to_ptr.vmem [resolvable:$true] %s1802
      %1808 = dma.vmem_to_hbm [thread:$0]  %s1803, 4608, %s12, [#allocation13], 384, 384, 24
    $region65: #{tpu_custom_call.1} parent=1 // pred_fallthru
      _
    // Predicated region
    $region66: #{tpu_custom_call.1} parent=1 // pred_check
      _
    $region67: #{tpu_custom_call.1} parent=1 // pred_check_branch
      %1810 = sbr.rel (0) target = $region69
    $region68: #{tpu_custom_call.1} parent=1 // pred_region
      %1811 = dma.done [#allocation4], 4608
    $region69: #{tpu_custom_call.1} parent=1 // pred_fallthru
      _
    // Predicated region
    $region70: #{tpu_custom_call.1} parent=1 // pred_check
      _
    $region71: #{tpu_custom_call.1} parent=1 // pred_check_branch
      %1813 = sbr.rel (0) target = $region73
    $region72: #{tpu_custom_call.1} parent=1 // pred_region
      %1814 = dma.done [#allocation10], 4608
    $region73: #{tpu_custom_call.1} parent=1 // pred_fallthru
      _
    // Predicated region
    $region74: #{tpu_custom_call.1} parent=1 // pred_check
      _
    $region75: #{tpu_custom_call.1} parent=1 // pred_check_branch
      %1816 = sbr.rel (0) target = $region77
    $region76: #{tpu_custom_call.1} parent=1 // pred_region
      %1817 = dma.done [#allocation10], 4608
    $region77: #{tpu_custom_call.1} parent=1 // pred_fallthru
      _
    // Predicated region
    $region78: #{tpu_custom_call.1} parent=1 // pred_check
      _
    $region79: #{tpu_custom_call.1} parent=1 // pred_check_branch
      %1819 = sbr.rel (0) target = $region81
    $region80: #{tpu_custom_call.1} parent=1 // pred_region
      %1820 = dma.done [#allocation13], 4608
    $region81: #{tpu_custom_call.1} parent=1 // pred_fallthru
      _
    %1821 = vsyncpa [#allocation3], 1
    %1822 = vsyncpa [#allocation6], 1
    %1823 = vsyncpa [#allocation4], 1
    %1824 = vsyncpa [#allocation10], 1
    %1825 = vsyncpa [#allocation13], 1

</llo_original>
